<compile_context>
chip_gen: v7x
topology: tpu7x:2x2x1
jax: 0.10.0
libtpu: 0.0.40
codegen_flags: <defaults>
</compile_context>

<pallas_src>
import jax
import jax.numpy as jnp
from jax.experimental import pallas as pl
from jax.experimental.pallas import tpu as pltpu

_LANE = 128


def _round_up(x, m):
    return (x + m - 1) // m * m


def _pad2d(x, rows, cols):
    r, c = x.shape
    return jnp.pad(x, ((0, rows - r), (0, cols - c)))


# ---------------------------------------------------------------------------
# Kernels
# ---------------------------------------------------------------------------
def _layer_math(a_ref, hsrc_ref, hdst_ref, w_ref, b_ref):
    # mean aggregation for this tile of dst rows: (tm, N_src) @ (N_src, Fp)
    # bf16 operands, f32 accumulation on the MXU.
    h_neigh = jnp.dot(a_ref[...], hsrc_ref[...],
                      preferred_element_type=jnp.float32)
    # fused self+neighbor weight matmul: [h_dst | h_neigh] @ [W_self; W_neigh]
    hcat = jnp.concatenate([hdst_ref[...], h_neigh.astype(jnp.bfloat16)],
                           axis=-1)
    return jnp.dot(hcat, w_ref[...],
                   preferred_element_type=jnp.float32) + b_ref[...]


def _sage_layer_relu_dropout_kernel(a_ref, hsrc_ref, hdst_ref, w_ref, b_ref,
                                    mask_ref, out_ref):
    y = _layer_math(a_ref, hsrc_ref, hdst_ref, w_ref, b_ref)
    # f32 elementwise epilogue; mask is a pre-scaled inverted-dropout keep mask
    # with values in {0, 1/(1-p)} (all ones in eval mode).
    y = jnp.maximum(y, 0.0) * mask_ref[...]
    out_ref[...] = y.astype(out_ref.dtype)


def _sage_layer_last_kernel(a_ref, hsrc_ref, hdst_ref, w_ref, b_ref, out_ref):
    y = _layer_math(a_ref, hsrc_ref, hdst_ref, w_ref, b_ref)
    out_ref[...] = y.astype(out_ref.dtype)


# ---------------------------------------------------------------------------
# Per-layer wrapper
# ---------------------------------------------------------------------------
def _sage_layer_call(a, h, w_cat, bias, mask, *, out_dtype, tm):
    n_dst, n_src = a.shape
    f_in = h.shape[1]
    f_out = w_cat.shape[1]
    assert n_dst % tm == 0
    grid = (n_dst // tm,)

    in_specs = [
        pl.BlockSpec((tm, n_src), lambda i: (i, 0)),        # A row tile (streamed from HBM)
        pl.BlockSpec((n_src, f_in), lambda i: (0, 0)),      # full src features (VMEM-resident)
        pl.BlockSpec((tm, f_in), lambda i: (i, 0)),         # dst-row tile for the self term
        pl.BlockSpec((2 * f_in, f_out), lambda i: (0, 0)),  # fused [W_self; W_neigh]
        pl.BlockSpec((1, f_out), lambda i: (0, 0)),         # bias
    ]
    args = [a, h, h, w_cat, bias]
    if mask is not None:
        in_specs.append(pl.BlockSpec((tm, f_out), lambda i: (i, 0)))
        args.append(mask)
        kernel = _sage_layer_relu_dropout_kernel
    else:
        kernel = _sage_layer_last_kernel

    # VMEM budget from the actual operand footprint (double-buffered), with
    # headroom for in-kernel temporaries; capped at 64 MiB so it is valid on v7x.
    est = 2 * (tm * n_src * 2            # A tile (bf16)
               + n_src * f_in * 2        # resident h_src (bf16)
               + tm * f_in * 2           # h_dst tile (bf16)
               + 2 * f_in * f_out * 2    # fused weight (bf16)
               + f_out * 4               # bias (f32)
               + tm * f_out * 4          # mask tile (f32)
               + tm * f_out * jnp.dtype(out_dtype).itemsize)
    vmem_limit = int(min(max(2 * est + (4 << 20), 32 << 20), 64 << 20))

    return pl.pallas_call(
        kernel,
        out_shape=jax.ShapeDtypeStruct((n_dst, f_out), out_dtype),
        grid_spec=pltpu.PrefetchScalarGridSpec(
            num_scalar_prefetch=0,
            grid=grid,
            in_specs=in_specs,
            out_specs=pl.BlockSpec((tm, f_out), lambda i: (i, 0)),
        ),
        compiler_params=pltpu.CompilerParams(
            dimension_semantics=("parallel",),
            vmem_limit_bytes=vmem_limit,
        ),
    )(*args)


# ---------------------------------------------------------------------------
# Full 3-layer forward
# ---------------------------------------------------------------------------
def sage_forward(adjs, x, params, dropout_masks=None):
    """3-layer GraphSAGE ('mean') forward.

    adjs:   list of 3 (N, N) row-normalized adjacency matrices (mean aggregation).
    x:      (N, in_size) node features.
    params: list of 3 tuples (W_self (in,out), W_neigh (in,out), bias (out,)).
    dropout_masks: None (eval) or 2 pre-scaled keep masks (N, hid) with values
                   in {0, 1/(1-p)} (training-mode inverted dropout, p=0.5).
    """
    n = x.shape[0]
    out_size = params[-1][0].shape[1]

    n_pad = _round_up(n, _LANE)
    # 256-aligned dst-row tiles fill the v6e/v7x 2x256x256 MXU; 128 otherwise.
    tm = 256 if n_pad % 256 == 0 else 128

    # bf16 operands (MXU throughput + halved HBM bytes for the O(N^2) adjacencies).
    h = _pad2d(x, n_pad, _round_up(x.shape[1], _LANE)).astype(jnp.bfloat16)
    adjs_p = [_pad2d(a, n_pad, n_pad).astype(jnp.bfloat16) for a in adjs]

    hid_pad = _round_up(params[0][0].shape[1], _LANE)
    if dropout_masks is None:
        masks_p = [jnp.ones((n_pad, hid_pad), jnp.float32)] * 2
    else:
        masks_p = [_pad2d(m.astype(jnp.float32), n_pad, hid_pad)
                   for m in dropout_masks]

    n_layers = len(params)
    for l, (w_self, w_neigh, bias) in enumerate(params):
        f_in_p = _round_up(w_self.shape[0], _LANE)
        f_out_p = _round_up(w_self.shape[1], _LANE)
        w_cat = jnp.concatenate(
            [_pad2d(w_self, f_in_p, f_out_p), _pad2d(w_neigh, f_in_p, f_out_p)],
            axis=0).astype(jnp.bfloat16)
        b_p = _pad2d(bias.reshape(1, -1), 1, f_out_p).astype(jnp.float32)

        is_last = (l == n_layers - 1)
        h = _sage_layer_call(
            adjs_p[l], h, w_cat, b_p,
            None if is_last else masks_p[l],
            out_dtype=jnp.float32 if is_last else jnp.bfloat16,
            tm=tm)

    return h[:n, :out_size]


# ---------------------------------------------------------------------------
# Pure-JAX reference (mirrors the kernel's dtype choices: bf16 matmuls, f32 acc)
# ---------------------------------------------------------------------------
def sage_reference(adjs, x, params, dropout_masks=None):
    h = x.astype(jnp.bfloat16)
    n_layers = len(params)
    for l, (a, (w_self, w_neigh, bias)) in enumerate(zip(adjs, params)):
        a16 = a.astype(jnp.bfloat16)
        h_neigh = jnp.dot(a16, h, preferred_element_type=jnp.float32)
        h_neigh = h_neigh.astype(jnp.bfloat16)
        y = (jnp.dot(h, w_self.astype(jnp.bfloat16),
                     preferred_element_type=jnp.float32)
             + jnp.dot(h_neigh, w_neigh.astype(jnp.bfloat16),
                       preferred_element_type=jnp.float32)
             + bias.reshape(1, -1))
        if l != n_layers - 1:
            y = jnp.maximum(y, 0.0)
            if dropout_masks is not None:
                y = y * dropout_masks[l]
            h = y.astype(jnp.bfloat16)
        else:
            h = y
    return h


# ---------------------------------------------------------------------------
# Example-input builders
# ---------------------------------------------------------------------------
def make_mean_adj(key, n):
    """Dense random graph; row-normalized so A @ h == mean over in-neighbors."""
    a = (jax.random.uniform(key, (n, n)) < 0.3).astype(jnp.float32)
    a = jnp.maximum(a, jnp.eye(n, dtype=jnp.float32))   # guarantee in-degree >= 1
    deg = a.sum(axis=1, keepdims=True)
    return a / deg


def linear_params(key, fan_in, fan_out):
    k1, k2, k3 = jax.random.split(key, 3)
    w_self = jax.random.normal(k1, (fan_in, fan_out), jnp.float32) * 0.1
    w_neigh = jax.random.normal(k2, (fan_in, fan_out), jnp.float32) * 0.1
    bias = jax.random.normal(k3, (fan_out,), jnp.float32) * 0.1
    return w_self, w_neigh, bias


if __name__ == "__main__":
    key = jax.random.PRNGKey(0)
    keys = jax.random.split(key, 9)

    N, in_size, hid_size, out_size = 512, 16, 32, 8

    adjs = [make_mean_adj(keys[i], N) for i in range(3)]       # one "block" per layer
    x = jax.random.normal(keys[3], (N, in_size), jnp.float32)  # node features (N, F)

    params = [
        linear_params(keys[4], in_size, hid_size),
        linear_params(keys[5], hid_size, hid_size),
        linear_params(keys[6], hid_size, out_size),
    ]

    # Training-mode forward (matches nn.Module.forward with Dropout(0.5) active).
    # Masks are drawn on the host so the kernel is deterministic & backend-agnostic.
    masks = [
        jax.random.bernoulli(keys[7], 0.5, (N, hid_size)).astype(jnp.float32) * 2.0,
        jax.random.bernoulli(keys[8], 0.5, (N, hid_size)).astype(jnp.float32) * 2.0,
    ]

    out = sage_forward(adjs, x, params, dropout_masks=masks)
    out = jax.block_until_ready(out)
    assert out.shape == (N, out_size)

    ref = sage_reference(adjs, x, params, dropout_masks=masks)
    max_err = float(jnp.max(jnp.abs(out - ref.astype(jnp.float32))))
    assert max_err < 2e-2, f"mismatch vs reference: max abs err {max_err}"

    print("KERNEL_OK")
</pallas_src>

<mosaic_0001>
module attributes {stable_mosaic.version = 11 : i64} {
  func.func @_sage_layer_relu_dropout_kernel(%arg0: i32, %arg1: memref<256x512xbf16, #tpu.memory_space<vmem>>, %arg2: memref<512x128xbf16, #tpu.memory_space<vmem>>, %arg3: memref<256x128xbf16, #tpu.memory_space<vmem>>, %arg4: memref<256x128xbf16, #tpu.memory_space<vmem>>, %arg5: memref<1x128xf32, #tpu.memory_space<vmem>>, %arg6: memref<256x128xf32, #tpu.memory_space<vmem>>, %arg7: memref<256x128xbf16, #tpu.memory_space<vmem>>) attributes {dimension_semantics = [#tpu.dimension_semantics<parallel>], iteration_bounds = array<i64: 2>, scalar_prefetch = 0 : i64, scratch_operands = 0 : i64, tpu.core_type = #tpu.core_type<tc>, window_params = [{transform_indices = @transform_0, window_bounds = array<i64: 256, 512>}, {pipeline_mode = #tpu.pipeline_mode<synchronous>, transform_indices = @transform_1, window_bounds = array<i64: 512, 128>}, {transform_indices = @transform_2, window_bounds = array<i64: 256, 128>}, {pipeline_mode = #tpu.pipeline_mode<synchronous>, transform_indices = @transform_3, window_bounds = array<i64: 256, 128>}, {pipeline_mode = #tpu.pipeline_mode<synchronous>, transform_indices = @transform_4, window_bounds = array<i64: 1, 128>}, {transform_indices = @transform_5, window_bounds = array<i64: 256, 128>}, {transform_indices = @transform_6, window_bounds = array<i64: 256, 128>}]} {
    %c0 = arith.constant 0 : index
    %c0_0 = arith.constant 0 : index
    %0 = vector.load %arg1[%c0, %c0_0] : memref<256x512xbf16, #tpu.memory_space<vmem>>, vector<256x512xbf16>
    %c0_1 = arith.constant 0 : index
    %c0_2 = arith.constant 0 : index
    %1 = vector.load %arg2[%c0_1, %c0_2] : memref<512x128xbf16, #tpu.memory_space<vmem>>, vector<512x128xbf16>
    %cst = arith.constant dense<0.000000e+00> : vector<256x128xf32>
    %2 = tpu.matmul %0, %1, %cst {dimension_numbers = #tpu.dot_dimension_numbers<[1], [0], [0], [1], [0, 0, 1, 1], [], []>} : vector<256x512xbf16>, vector<512x128xbf16>, vector<256x128xf32> -> vector<256x128xf32>
    %c0_3 = arith.constant 0 : index
    %c0_4 = arith.constant 0 : index
    %3 = vector.load %arg3[%c0_3, %c0_4] : memref<256x128xbf16, #tpu.memory_space<vmem>>, vector<256x128xbf16>
    %4 = arith.truncf %2 : vector<256x128xf32> to vector<256x128xbf16>
    %5 = tpu.concatenate %3, %4 in 1 : vector<256x128xbf16>, vector<256x128xbf16> -> vector<256x256xbf16>
    %c0_5 = arith.constant 0 : index
    %c0_6 = arith.constant 0 : index
    %6 = vector.load %arg4[%c0_5, %c0_6] : memref<256x128xbf16, #tpu.memory_space<vmem>>, vector<256x128xbf16>
    %cst_7 = arith.constant dense<0.000000e+00> : vector<256x128xf32>
    %7 = tpu.matmul %5, %6, %cst_7 {dimension_numbers = #tpu.dot_dimension_numbers<[1], [0], [0], [1], [0, 0, 1, 1], [], []>} : vector<256x256xbf16>, vector<256x128xbf16>, vector<256x128xf32> -> vector<256x128xf32>
    %c0_8 = arith.constant 0 : index
    %c0_9 = arith.constant 0 : index
    %8 = vector.load %arg5[%c0_8, %c0_9] : memref<1x128xf32, #tpu.memory_space<vmem>>, vector<1x128xf32>
    %9 = vector.broadcast %8 : vector<1x128xf32> to vector<256x128xf32>
    %10 = arith.addf %7, %9 : vector<256x128xf32>
    %cst_10 = arith.constant 0.000000e+00 : f32
    %11 = vector.broadcast %cst_10 : f32 to vector<256x128xf32>
    %12 = arith.maximumf %10, %11 : vector<256x128xf32>
    %c0_11 = arith.constant 0 : index
    %c0_12 = arith.constant 0 : index
    %13 = vector.load %arg6[%c0_11, %c0_12] : memref<256x128xf32, #tpu.memory_space<vmem>>, vector<256x128xf32>
    %14 = arith.mulf %12, %13 : vector<256x128xf32>
    %15 = arith.truncf %14 : vector<256x128xf32> to vector<256x128xbf16>
    %c0_13 = arith.constant 0 : index
    %c0_14 = arith.constant 0 : index
    %16 = vector.load %arg7[%c0_13, %c0_14] : memref<256x128xbf16, #tpu.memory_space<vmem>>, vector<256x128xbf16>
    tpu.vector_store %arg7[%c0_13, %c0_14], %15 {strides = array<i32>} : memref<256x128xbf16, #tpu.memory_space<vmem>>, vector<256x128xbf16>,
    return
  }
  func.func @transform_0(%arg0: i32) -> (i32, i32) {
    %c0_i32 = arith.constant 0 : i32
    %c0_i32_0 = arith.constant 0 : i32
    return %arg0, %c0_i32 : i32, i32
  }
  func.func @transform_1(%arg0: i32) -> (i32, i32) {
    %c0_i32 = arith.constant 0 : i32
    %c0_i32_0 = arith.constant 0 : i32
    %c0_i32_1 = arith.constant 0 : i32
    return %c0_i32, %c0_i32_0 : i32, i32
  }
  func.func @transform_2(%arg0: i32) -> (i32, i32) {
    %c0_i32 = arith.constant 0 : i32
    %c0_i32_0 = arith.constant 0 : i32
    return %arg0, %c0_i32 : i32, i32
  }
  func.func @transform_3(%arg0: i32) -> (i32, i32) {
    %c0_i32 = arith.constant 0 : i32
    %c0_i32_0 = arith.constant 0 : i32
    %c0_i32_1 = arith.constant 0 : i32
    return %c0_i32, %c0_i32_0 : i32, i32
  }
  func.func @transform_4(%arg0: i32) -> (i32, i32) {
    %c0_i32 = arith.constant 0 : i32
    %c0_i32_0 = arith.constant 0 : i32
    %c0_i32_1 = arith.constant 0 : i32
    return %c0_i32, %c0_i32_0 : i32, i32
  }
  func.func @transform_5(%arg0: i32) -> (i32, i32) {
    %c0_i32 = arith.constant 0 : i32
    %c0_i32_0 = arith.constant 0 : i32
    return %arg0, %c0_i32 : i32, i32
  }
  func.func @transform_6(%arg0: i32) -> (i32, i32) {
    %c0_i32 = arith.constant 0 : i32
    %c0_i32_0 = arith.constant 0 : i32
    return %arg0, %c0_i32 : i32, i32
  }
}

</mosaic_0001>

<llo_original>
// kernel: tpu_custom_call.1
$region0: #{tpu_custom_call.1}
  #allocation0 [shape = 'u32[]', space=smem, size = 0x4, offset = 0x4, fixed_abs, tag = 'smem constant byte address 0x4 - core index']
  #allocation1 [shape = 'u32[144,128]{1,0:T(1,128)}', space=vmem, size = 0x12000, scoped, tag = 'internal scratch']
  %s0 = inlined_call_operand.hbm [shape: bf16[512,512], index: 0, kind: input, shape index: {}]
  %s1 = inlined_call_operand.hbm [shape: bf16[512,128], index: 1, kind: input, shape index: {}]
  %s2 = inlined_call_operand.hbm [shape: bf16[512,128], index: 2, kind: input, shape index: {}]
  %s3 = inlined_call_operand.hbm [shape: bf16[256,128], index: 3, kind: input, shape index: {}]
  %s4 = inlined_call_operand.vmem [shape: f32[1,128], index: 4, kind: input, shape index: {}]
  %s5 = inlined_call_operand.hbm [shape: f32[512,128], index: 5, kind: input, shape index: {}]
  %s6 = inlined_call_operand.hbm [shape: bf16[512,128], index: 6, kind: output, shape index: {}]
  %s7 = sld [smem:[#allocation0]]
  $region77: #{tpu_custom_call.1} parent=0
    _
  %s9 = ssub.s32 1, %s7
  %s10 = scalar_select 0, %s9, %s7
  $region1: #{tpu_custom_call.1} parent=0
    #allocation2 [shape = 'u8[524288]{0}', space=vmem, size = 0x80000, scoped, tag = 'input window, operand 0']
    #allocation3 [shape = 's32[2]{0}', space=sflag, size = 0x8, scoped, tag = 'scoped memory for tpu_custom_call.1']
    #allocation4 [shape = 's32[2]{0}', space=sflag, size = 0x8, scoped, tag = 'scoped memory for tpu_custom_call.1']
    #allocation5 [shape = 'u8[131072]{0}', space=vmem, size = 0x20000, scoped, tag = 'input window, operand 1, single buffered']
    #allocation6 [shape = 's32[1]{0}', space=sflag, size = 0x4, scoped, tag = 'scoped memory for tpu_custom_call.1']
    #allocation7 [shape = 'u8[131072]{0}', space=vmem, size = 0x20000, scoped, tag = 'input window, operand 2']
    #allocation8 [shape = 'u8[65536]{0}', space=vmem, size = 0x10000, scoped, tag = 'input window, operand 3, single buffered']
    #allocation9 [shape = 'u8[262144]{0}', space=vmem, size = 0x40000, scoped, tag = 'input window, operand 5']
    #allocation10 [shape = 's32[2]{0}', space=sflag, size = 0x8, scoped, tag = 'scoped memory for tpu_custom_call.1']
    #allocation11 [shape = 'u8[131072]{0}', space=vmem, size = 0x20000, scoped, tag = 'output window, operand 0']
    %11 = vsyncpa [#allocation3], 0
    %s12 = scalar_lea.sflag [#allocation3], 1
    %13 = vsyncpa %s12, 0
    %14 = vsyncpa [#allocation6], 0
    %15 = vsyncpa [#allocation10], 0
    %s16 = scalar_lea.sflag [#allocation10], 1
    %17 = vsyncpa %s16, 0
    %18 = vsyncpa [#allocation4], 0
    %s19 = scalar_lea.sflag [#allocation4], 1
    %20 = vsyncpa %s19, 0
    loop: start=0, step=1, limit=4
    $region2: #{tpu_custom_call.1} parent=1 // loop_pre_header
      _
    $region3: #{tpu_custom_call.1} parent=1 // loop_header
      %s22 = sphi 0, %s26
      %p23 = scmp.ge.s32.totalorder %s22, 4
      %s32 = sphi 0, %s34
      %s35 = sphi 0, %s32
      %s36 = sphi 0, %s35
      %s52 = sphi 0, %s36
      %s56 = sphi 0, %s56
      %s58 = sphi 0, %s56
      %s59 = sphi 0, %s58
      %s73 = sphi 0, %s59
      %s79 = sphi 0, %s81
      %s82 = sphi 0, %s79
      %s83 = sphi 0, %s82
      %s99 = sphi 0, %s83
      %s103 = sphi 0, %s103
      %s105 = sphi 0, %s103
      %s106 = sphi 0, %s105
      %s120 = sphi 0, %s106
      %s124 = sphi 0, %s124
      %s126 = sphi 0, %s124
      %s127 = sphi 0, %s126
      %s141 = sphi 0, %s127
      %s147 = sphi 0, %s149
      %s150 = sphi 0, %s147
      %s151 = sphi 0, %s150
      %s167 = sphi 0, %s151
      %s173 = sphi 0, %s175
      %s176 = sphi 0, %s173
      %s177 = sphi 0, %s176
      %s193 = sphi 0, %s177
    $region4: #{tpu_custom_call.1} parent=1 // loop_header_branch
      %25 = sbr.rel (%p23) target = $region8
    $region5: #{tpu_custom_call.1} parent=1 // loop_body
      %s27 = ssub.s32 %s22, 1
      %s28 = ssub.s32 %s22, 2
      %s29 = sadd.s32 %s22, 1
      %s30 = ssub.s32 %s22, %s29
      %p31 = scmp.eq.s32.totalorder %s30, 0
      %s33 = sadd.s32 %s32, 1
      %s34 = scalar_select %p31, %s32, %s33
      %p37 = pneg %p31
      %p38 = scmp.eq.s32.totalorder %s22, 1
      %p39 = por %p37, %p38
      %p40 = scmp.ne.s32.totalorder %s32, %s35
      %p41 = scmp.eq.s32.totalorder %s22, 0
      %p42 = por %p40, %p41
      %p43 = scmp.ne.s32.totalorder %s32, %s35
      %p44 = scmp.eq.s32.totalorder %s27, 1
      %p45 = por %p43, %p44
      %p46 = scmp.ne.s32.totalorder %s35, %s36
      %p47 = scmp.eq.s32.totalorder %s27, 0
      %p48 = por %p46, %p47
      %p49 = scmp.ne.s32.totalorder %s35, %s36
      %p50 = scmp.eq.s32.totalorder %s28, 1
      %p51 = por %p49, %p50
      %p53 = scmp.ne.s32.totalorder %s36, %s52
      %p54 = scmp.eq.s32.totalorder %s28, 0
      %p55 = por %p53, %p54
      %s57 = sadd.s32 %s56, 1
      %p60 = scmp.eq.s32.totalorder %s22, 1
      %p61 = scmp.ne.s32.totalorder %s56, %s58
      %p62 = scmp.eq.s32.totalorder %s22, 0
      %p63 = por %p61, %p62
      %p64 = scmp.ne.s32.totalorder %s56, %s58
      %p65 = scmp.eq.s32.totalorder %s27, 1
      %p66 = por %p64, %p65
      %p67 = scmp.ne.s32.totalorder %s58, %s59
      %p68 = scmp.eq.s32.totalorder %s27, 0
      %p69 = por %p67, %p68
      %p70 = scmp.ne.s32.totalorder %s58, %s59
      %p71 = scmp.eq.s32.totalorder %s28, 1
      %p72 = por %p70, %p71
      %p74 = scmp.ne.s32.totalorder %s59, %s73
      %p75 = scmp.eq.s32.totalorder %s28, 0
      %p76 = por %p74, %p75
      %s77 = ssub.s32 %s22, %s29
      %p78 = scmp.eq.s32.totalorder %s77, 0
      %s80 = sadd.s32 %s79, 1
      %s81 = scalar_select %p78, %s79, %s80
      %p84 = pneg %p78
      %p85 = scmp.eq.s32.totalorder %s22, 1
      %p86 = por %p84, %p85
      %p87 = scmp.ne.s32.totalorder %s79, %s82
      %p88 = scmp.eq.s32.totalorder %s22, 0
      %p89 = por %p87, %p88
      %p90 = scmp.ne.s32.totalorder %s79, %s82
      %p91 = scmp.eq.s32.totalorder %s27, 1
      %p92 = por %p90, %p91
      %p93 = scmp.ne.s32.totalorder %s82, %s83
      %p94 = scmp.eq.s32.totalorder %s27, 0
      %p95 = por %p93, %p94
      %p96 = scmp.ne.s32.totalorder %s82, %s83
      %p97 = scmp.eq.s32.totalorder %s28, 1
      %p98 = por %p96, %p97
      %p100 = scmp.ne.s32.totalorder %s83, %s99
      %p101 = scmp.eq.s32.totalorder %s28, 0
      %p102 = por %p100, %p101
      %s104 = sadd.s32 %s103, 1
      %p107 = scmp.eq.s32.totalorder %s22, 1
      %p108 = scmp.ne.s32.totalorder %s103, %s105
      %p109 = scmp.eq.s32.totalorder %s22, 0
      %p110 = por %p108, %p109
      %p111 = scmp.ne.s32.totalorder %s103, %s105
      %p112 = scmp.eq.s32.totalorder %s27, 1
      %p113 = por %p111, %p112
      %p114 = scmp.ne.s32.totalorder %s105, %s106
      %p115 = scmp.eq.s32.totalorder %s27, 0
      %p116 = por %p114, %p115
      %p117 = scmp.ne.s32.totalorder %s105, %s106
      %p118 = scmp.eq.s32.totalorder %s28, 1
      %p119 = por %p117, %p118
      %p121 = scmp.ne.s32.totalorder %s106, %s120
      %p122 = scmp.eq.s32.totalorder %s28, 0
      %p123 = por %p121, %p122
      %s125 = sadd.s32 %s124, 1
      %p128 = scmp.eq.s32.totalorder %s22, 1
      %p129 = scmp.ne.s32.totalorder %s124, %s126
      %p130 = scmp.eq.s32.totalorder %s22, 0
      %p131 = por %p129, %p130
      %p132 = scmp.ne.s32.totalorder %s124, %s126
      %p133 = scmp.eq.s32.totalorder %s27, 1
      %p134 = por %p132, %p133
      %p135 = scmp.ne.s32.totalorder %s126, %s127
      %p136 = scmp.eq.s32.totalorder %s27, 0
      %p137 = por %p135, %p136
      %p138 = scmp.ne.s32.totalorder %s126, %s127
      %p139 = scmp.eq.s32.totalorder %s28, 1
      %p140 = por %p138, %p139
      %p142 = scmp.ne.s32.totalorder %s127, %s141
      %p143 = scmp.eq.s32.totalorder %s28, 0
      %p144 = por %p142, %p143
      %s145 = ssub.s32 %s22, %s29
      %p146 = scmp.eq.s32.totalorder %s145, 0
      %s148 = sadd.s32 %s147, 1
      %s149 = scalar_select %p146, %s147, %s148
      %p152 = pneg %p146
      %p153 = scmp.eq.s32.totalorder %s22, 1
      %p154 = por %p152, %p153
      %p155 = scmp.ne.s32.totalorder %s147, %s150
      %p156 = scmp.eq.s32.totalorder %s22, 0
      %p157 = por %p155, %p156
      %p158 = scmp.ne.s32.totalorder %s147, %s150
      %p159 = scmp.eq.s32.totalorder %s27, 1
      %p160 = por %p158, %p159
      %p161 = scmp.ne.s32.totalorder %s150, %s151
      %p162 = scmp.eq.s32.totalorder %s27, 0
      %p163 = por %p161, %p162
      %p164 = scmp.ne.s32.totalorder %s150, %s151
      %p165 = scmp.eq.s32.totalorder %s28, 1
      %p166 = por %p164, %p165
      %p168 = scmp.ne.s32.totalorder %s151, %s167
      %p169 = scmp.eq.s32.totalorder %s28, 0
      %p170 = por %p168, %p169
      %s171 = ssub.s32 %s22, %s29
      %p172 = scmp.eq.s32.totalorder %s171, 0
      %s174 = sadd.s32 %s173, 1
      %s175 = scalar_select %p172, %s173, %s174
      %p178 = pneg %p172
      %p179 = scmp.eq.s32.totalorder %s22, 1
      %p180 = por %p178, %p179
      %p181 = scmp.ne.s32.totalorder %s173, %s176
      %p182 = scmp.eq.s32.totalorder %s22, 0
      %p183 = por %p181, %p182
      %p184 = scmp.ne.s32.totalorder %s173, %s176
      %p185 = scmp.eq.s32.totalorder %s27, 1
      %p186 = por %p184, %p185
      %p187 = scmp.ne.s32.totalorder %s176, %s177
      %p188 = scmp.eq.s32.totalorder %s27, 0
      %p189 = por %p187, %p188
      %p190 = scmp.ne.s32.totalorder %s176, %s177
      %p191 = scmp.eq.s32.totalorder %s28, 1
      %p192 = por %p190, %p191
      %p194 = scmp.ne.s32.totalorder %s177, %s193
      %p195 = scmp.eq.s32.totalorder %s28, 0
      %p196 = por %p194, %p195
      %p197 = scmp.le.s32.totalorder 1, %s22
      %p198 = scmp.lt.s32.totalorder %s22, 3
      %p199 = pnand %p197, %p198
      %p200 = pneg %p199
      // Predicated region
      $region9: #{tpu_custom_call.1} parent=5 // pred_check
        _
      $region10: #{tpu_custom_call.1} parent=5 // pred_check_branch
        %202 = sbr.rel (%p199) target = $region12
      $region11: #{tpu_custom_call.1} parent=5 // pred_region
        %s203 = ssub.s32 %s22, 1
        // Predicated region
        $region13: #{tpu_custom_call.1} parent=11 // pred_check
          %p204 = pneg %p69
        $region14: #{tpu_custom_call.1} parent=11 // pred_check_branch
          %206 = sbr.rel (%p204) target = $region16
        $region15: #{tpu_custom_call.1} parent=11 // pred_region
          %s208 = ssub.s32 4096, 4096
          %209 = vsyncadd [#allocation6], %s208
          %s210 = sshll.u32 [#allocation5], 4
          %s211 = int_to_ptr.vmem [resolvable:$true] %s210
          %216 = dma.hbm_to_vmem [thread:$0]  %s1, 4096, %s211, [#allocation6], 64, 64, 4
        $region16: #{tpu_custom_call.1} parent=11 // pred_fallthru
          _
        // Predicated region
        $region17: #{tpu_custom_call.1} parent=11 // pred_check
          %p217 = pneg %p116
        $region18: #{tpu_custom_call.1} parent=11 // pred_check_branch
          %219 = sbr.rel (%p217) target = $region20
        $region19: #{tpu_custom_call.1} parent=11 // pred_region
          %s221 = ssub.s32 2048, 2048
          %222 = vsyncadd [#allocation6], %s221
          %s223 = sshll.u32 [#allocation8], 4
          %s224 = int_to_ptr.vmem [resolvable:$true] %s223
          %229 = dma.hbm_to_vmem [thread:$0]  %s3, 2048, %s224, [#allocation6], 64, 64, 4
        $region20: #{tpu_custom_call.1} parent=11 // pred_fallthru
          _
        // Predicated region
        $region21: #{tpu_custom_call.1} parent=11 // pred_check
          %p230 = pneg %p137
        $region22: #{tpu_custom_call.1} parent=11 // pred_check_branch
          %232 = sbr.rel (%p230) target = $region24
        $region23: #{tpu_custom_call.1} parent=11 // pred_region
          _
        $region24: #{tpu_custom_call.1} parent=11 // pred_fallthru
          _
      $region12: #{tpu_custom_call.1} parent=5 // pred_fallthru
        _
      %p233 = scmp.lt.s32.totalorder %s22, 2
      // Predicated region
      $region25: #{tpu_custom_call.1} parent=5 // pred_check
        %p234 = pneg %p233
      $region26: #{tpu_custom_call.1} parent=5 // pred_check_branch
        %236 = sbr.rel (%p234) target = $region28
      $region27: #{tpu_custom_call.1} parent=5 // pred_region
        // Predicated region
        $region29: #{tpu_custom_call.1} parent=27 // pred_check
          %p237 = pneg %p42
        $region30: #{tpu_custom_call.1} parent=27 // pred_check_branch
          %239 = sbr.rel (%p237) target = $region32
        $region31: #{tpu_custom_call.1} parent=27 // pred_region
          %s240 = sand.u32 %s22, 1
          %s241 = scalar_lea.sflag [#allocation3], %s240
          %s242 = sand.u32 %s32, 1
          %s243 = smul.addr %s242, 512
          %s244 = scalar_lea.vmem [#allocation2], %s243
          %s245 = smul.u32 32, %s22
          %s247 = ssub.s32 8192, 8192
          %248 = vsyncadd %s241, %s247
          %s249 = smul.addr %s245, 4
          %s250 = smul.addr %s249, 64
          %s251 = scalar_lea.hbm %s0, %s250
          %s252 = sshll.u32 %s244, 4
          %s253 = int_to_ptr.vmem [resolvable:$true] %s252
          %258 = dma.hbm_to_vmem [thread:$0]  %s251, 8192, %s253, %s241, 256, 256, 16
        $region32: #{tpu_custom_call.1} parent=27 // pred_fallthru
          _
        // Predicated region
        $region33: #{tpu_custom_call.1} parent=27 // pred_check
          %p259 = pneg %p89
        $region34: #{tpu_custom_call.1} parent=27 // pred_check_branch
          %261 = sbr.rel (%p259) target = $region36
        $region35: #{tpu_custom_call.1} parent=27 // pred_region
          %s262 = sand.u32 %s22, 1
          %s263 = scalar_lea.sflag [#allocation3], %s262
          %s264 = sand.u32 %s79, 1
          %s265 = smul.addr %s264, 128
          %s266 = scalar_lea.vmem [#allocation7], %s265
          %s267 = smul.u32 32, %s22
          %s269 = ssub.s32 2048, 2048
          %270 = vsyncadd %s263, %s269
          %s271 = smul.addr %s267, 64
          %s272 = scalar_lea.hbm %s2, %s271
          %s273 = sshll.u32 %s266, 4
          %s274 = int_to_ptr.vmem [resolvable:$true] %s273
          %279 = dma.hbm_to_vmem [thread:$0]  %s272, 2048, %s274, %s263, 64, 64, 4
        $region36: #{tpu_custom_call.1} parent=27 // pred_fallthru
          _
        // Predicated region
        $region37: #{tpu_custom_call.1} parent=27 // pred_check
          %p280 = pneg %p157
        $region38: #{tpu_custom_call.1} parent=27 // pred_check_branch
          %282 = sbr.rel (%p280) target = $region40
        $region39: #{tpu_custom_call.1} parent=27 // pred_region
          %s283 = sand.u32 %s147, 1
          %s284 = scalar_lea.sflag [#allocation10], %s283
          %s285 = sand.u32 %s147, 1
          %s286 = smul.addr %s285, 256
          %s287 = scalar_lea.vmem [#allocation9], %s286
          %s288 = smul.u32 32, %s22
          %s290 = ssub.s32 4096, 4096
          %291 = vsyncadd %s284, %s290
          %s292 = smul.addr %s288, 128
          %s293 = scalar_lea.hbm %s5, %s292
          %s294 = sshll.u32 %s287, 4
          %s295 = int_to_ptr.vmem [resolvable:$true] %s294
          %300 = dma.hbm_to_vmem [thread:$0]  %s293, 4096, %s295, %s284, 128, 128, 8
        $region40: #{tpu_custom_call.1} parent=27 // pred_fallthru
          _
      $region28: #{tpu_custom_call.1} parent=5 // pred_fallthru
        _
      %p301 = scmp.le.s32.totalorder 1, %s22
      %p302 = scmp.lt.s32.totalorder %s22, 3
      %p303 = pnand %p301, %p302
      %p304 = pneg %p303
      // Predicated region
      $region41: #{tpu_custom_call.1} parent=5 // pred_check
        _
      $region42: #{tpu_custom_call.1} parent=5 // pred_check_branch
        %306 = sbr.rel (%p303) target = $region44
      $region43: #{tpu_custom_call.1} parent=5 // pred_region
        %s307 = ssub.s32 %s22, 1
        %s308 = sand.u32 %s27, 1
        %s309 = scalar_lea.sflag [#allocation3], %s308
        %s310 = sand.u32 %s35, 1
        %s311 = smul.addr %s310, 512
        %s312 = scalar_lea.vmem [#allocation2], %s311
        // Predicated region
        $region45: #{tpu_custom_call.1} parent=43 // pred_check
          %p313 = pneg %p48
        $region46: #{tpu_custom_call.1} parent=43 // pred_check_branch
          %315 = sbr.rel (%p313) target = $region48
        $region47: #{tpu_custom_call.1} parent=43 // pred_region
          %316 = dma.done %s309, 8192
        $region48: #{tpu_custom_call.1} parent=43 // pred_fallthru
          _
        // Predicated region
        $region49: #{tpu_custom_call.1} parent=43 // pred_check
          %p317 = pneg %p69
        $region50: #{tpu_custom_call.1} parent=43 // pred_check_branch
          %319 = sbr.rel (%p317) target = $region52
        $region51: #{tpu_custom_call.1} parent=43 // pred_region
          %320 = dma.done [#allocation6], 4096
        $region52: #{tpu_custom_call.1} parent=43 // pred_fallthru
          _
        %s321 = sand.u32 %s27, 1
        %s322 = scalar_lea.sflag [#allocation3], %s321
        %s323 = sand.u32 %s82, 1
        %s324 = smul.addr %s323, 128
        %s325 = scalar_lea.vmem [#allocation7], %s324
        // Predicated region
        $region53: #{tpu_custom_call.1} parent=43 // pred_check
          %p326 = pneg %p95
        $region54: #{tpu_custom_call.1} parent=43 // pred_check_branch
          %328 = sbr.rel (%p326) target = $region56
        $region55: #{tpu_custom_call.1} parent=43 // pred_region
          %329 = dma.done %s322, 2048
        $region56: #{tpu_custom_call.1} parent=43 // pred_fallthru
          _
        // Predicated region
        $region57: #{tpu_custom_call.1} parent=43 // pred_check
          %p330 = pneg %p116
        $region58: #{tpu_custom_call.1} parent=43 // pred_check_branch
          %332 = sbr.rel (%p330) target = $region60
        $region59: #{tpu_custom_call.1} parent=43 // pred_region
          %333 = dma.done [#allocation6], 2048
        $region60: #{tpu_custom_call.1} parent=43 // pred_fallthru
          _
        %s334 = sand.u32 %s150, 1
        %s335 = scalar_lea.sflag [#allocation10], %s334
        %s336 = sand.u32 %s150, 1
        %s337 = smul.addr %s336, 256
        %s338 = scalar_lea.vmem [#allocation9], %s337
        // Predicated region
        $region61: #{tpu_custom_call.1} parent=43 // pred_check
          %p339 = pneg %p163
        $region62: #{tpu_custom_call.1} parent=43 // pred_check_branch
          %341 = sbr.rel (%p339) target = $region64
        $region63: #{tpu_custom_call.1} parent=43 // pred_region
          %342 = dma.done %s335, 4096
        $region64: #{tpu_custom_call.1} parent=43 // pred_fallthru
          _
        %s343 = sand.u32 %s27, 1
        %s344 = scalar_lea.sflag [#allocation3], %s343
        %s345 = sand.u32 %s35, 1
        %s346 = smul.addr %s345, 512
        %s347 = scalar_lea.vmem [#allocation2], %s346
        %p348 = pneg %p48
        %p349 = pneg %p45
        %p350 = pneg %p69
        %p351 = pneg %p66
        %s352 = sand.u32 %s27, 1
        %s353 = scalar_lea.sflag [#allocation3], %s352
        %s354 = sand.u32 %s82, 1
        %s355 = smul.addr %s354, 128
        %s356 = scalar_lea.vmem [#allocation7], %s355
        %p357 = pneg %p95
        %p358 = pneg %p92
        %p359 = pneg %p116
        %p360 = pneg %p113
        %p361 = pneg %p137
        %p362 = pneg %p134
        %s363 = sand.u32 %s150, 1
        %s364 = scalar_lea.sflag [#allocation10], %s363
        %s365 = sand.u32 %s150, 1
        %s366 = smul.addr %s365, 256
        %s367 = scalar_lea.vmem [#allocation9], %s366
        %p368 = pneg %p163
        %p369 = pneg %p160
        %p370 = pneg %p189
        %p371 = pneg %p186
        %s372 = sand.u32 %s176, 1
        %s373 = scalar_lea.sflag [#allocation4], %s372
        %s374 = sand.u32 %s176, 1
        %s375 = smul.addr %s374, 128
        %s376 = scalar_lea.vmem [#allocation11], %s375
        %s377 = smul.u32 32, %s27
        %s378 = smul.u32 32, %s27
        %s379 = smul.u32 32, %s27
        %s380 = smul.u32 32, %s27
        %v382 = vld [vmem:[%s312] sm:$0xff]
        %v383 = vld [vmem:[%s312 + $0x8] sm:$0xff]
        %v384 = vld [vmem:[%s312 + $0x10] sm:$0xff]
        %v385 = vld [vmem:[%s312 + $0x18] sm:$0xff]
        %v386 = vld [vmem:[%s312 + $0x20] sm:$0xff]
        %v387 = vld [vmem:[%s312 + $0x28] sm:$0xff]
        %v388 = vld [vmem:[%s312 + $0x30] sm:$0xff]
        %v389 = vld [vmem:[%s312 + $0x38] sm:$0xff]
        %v390 = vld [vmem:[%s312 + $0x40] sm:$0xff]
        %v391 = vld [vmem:[%s312 + $0x48] sm:$0xff]
        %v392 = vld [vmem:[%s312 + $0x50] sm:$0xff]
        %v393 = vld [vmem:[%s312 + $0x58] sm:$0xff]
        %v394 = vld [vmem:[%s312 + $0x60] sm:$0xff]
        %v395 = vld [vmem:[%s312 + $0x68] sm:$0xff]
        %v396 = vld [vmem:[%s312 + $0x70] sm:$0xff]
        %v397 = vld [vmem:[%s312 + $0x78] sm:$0xff]
        %v398 = vld [vmem:[%s312 + $0x80] sm:$0xff]
        %v399 = vld [vmem:[%s312 + $0x88] sm:$0xff]
        %v400 = vld [vmem:[%s312 + $0x90] sm:$0xff]
        %v401 = vld [vmem:[%s312 + $0x98] sm:$0xff]
        %v402 = vld [vmem:[%s312 + $0xa0] sm:$0xff]
        %v403 = vld [vmem:[%s312 + $0xa8] sm:$0xff]
        %v404 = vld [vmem:[%s312 + $0xb0] sm:$0xff]
        %v405 = vld [vmem:[%s312 + $0xb8] sm:$0xff]
        %v406 = vld [vmem:[%s312 + $0xc0] sm:$0xff]
        %v407 = vld [vmem:[%s312 + $0xc8] sm:$0xff]
        %v408 = vld [vmem:[%s312 + $0xd0] sm:$0xff]
        %v409 = vld [vmem:[%s312 + $0xd8] sm:$0xff]
        %v410 = vld [vmem:[%s312 + $0xe0] sm:$0xff]
        %v411 = vld [vmem:[%s312 + $0xe8] sm:$0xff]
        %v412 = vld [vmem:[%s312 + $0xf0] sm:$0xff]
        %v413 = vld [vmem:[%s312 + $0xf8] sm:$0xff]
        %v414 = vld [vmem:[%s312 + $0x100] sm:$0xff]
        %v415 = vld [vmem:[%s312 + $0x108] sm:$0xff]
        %v416 = vld [vmem:[%s312 + $0x110] sm:$0xff]
        %v417 = vld [vmem:[%s312 + $0x118] sm:$0xff]
        %v418 = vld [vmem:[%s312 + $0x120] sm:$0xff]
        %v419 = vld [vmem:[%s312 + $0x128] sm:$0xff]
        %v420 = vld [vmem:[%s312 + $0x130] sm:$0xff]
        %v421 = vld [vmem:[%s312 + $0x138] sm:$0xff]
        %v422 = vld [vmem:[%s312 + $0x140] sm:$0xff]
        %v423 = vld [vmem:[%s312 + $0x148] sm:$0xff]
        %v424 = vld [vmem:[%s312 + $0x150] sm:$0xff]
        %v425 = vld [vmem:[%s312 + $0x158] sm:$0xff]
        %v426 = vld [vmem:[%s312 + $0x160] sm:$0xff]
        %v427 = vld [vmem:[%s312 + $0x168] sm:$0xff]
        %v428 = vld [vmem:[%s312 + $0x170] sm:$0xff]
        %v429 = vld [vmem:[%s312 + $0x178] sm:$0xff]
        %v430 = vld [vmem:[%s312 + $0x180] sm:$0xff]
        %v431 = vld [vmem:[%s312 + $0x188] sm:$0xff]
        %v432 = vld [vmem:[%s312 + $0x190] sm:$0xff]
        %v433 = vld [vmem:[%s312 + $0x198] sm:$0xff]
        %v434 = vld [vmem:[%s312 + $0x1a0] sm:$0xff]
        %v435 = vld [vmem:[%s312 + $0x1a8] sm:$0xff]
        %v436 = vld [vmem:[%s312 + $0x1b0] sm:$0xff]
        %v437 = vld [vmem:[%s312 + $0x1b8] sm:$0xff]
        %v438 = vld [vmem:[%s312 + $0x1c0] sm:$0xff]
        %v439 = vld [vmem:[%s312 + $0x1c8] sm:$0xff]
        %v440 = vld [vmem:[%s312 + $0x1d0] sm:$0xff]
        %v441 = vld [vmem:[%s312 + $0x1d8] sm:$0xff]
        %v442 = vld [vmem:[%s312 + $0x1e0] sm:$0xff]
        %v443 = vld [vmem:[%s312 + $0x1e8] sm:$0xff]
        %v444 = vld [vmem:[%s312 + $0x1f0] sm:$0xff]
        %v445 = vld [vmem:[%s312 + $0x1f8] sm:$0xff]
        %v446 = vld [vmem:[#allocation5] sm:$0xf]
        %v447 = vld [vmem:[#allocation5 + $0x4] sm:$0xf]
        %v448 = vld [vmem:[#allocation5 + $0x8] sm:$0xf]
        %v449 = vld [vmem:[#allocation5 + $0xc] sm:$0xf]
        %v450 = vld [vmem:[#allocation5 + $0x10] sm:$0xf]
        %v451 = vld [vmem:[#allocation5 + $0x14] sm:$0xf]
        %v452 = vld [vmem:[#allocation5 + $0x18] sm:$0xf]
        %v453 = vld [vmem:[#allocation5 + $0x1c] sm:$0xf]
        %v454 = vld [vmem:[#allocation5 + $0x20] sm:$0xf]
        %v455 = vld [vmem:[#allocation5 + $0x24] sm:$0xf]
        %v456 = vld [vmem:[#allocation5 + $0x28] sm:$0xf]
        %v457 = vld [vmem:[#allocation5 + $0x2c] sm:$0xf]
        %v458 = vld [vmem:[#allocation5 + $0x30] sm:$0xf]
        %v459 = vld [vmem:[#allocation5 + $0x34] sm:$0xf]
        %v460 = vld [vmem:[#allocation5 + $0x38] sm:$0xf]
        %v461 = vld [vmem:[#allocation5 + $0x3c] sm:$0xf]
        %v462 = vld [vmem:[#allocation5 + $0x40] sm:$0xf]
        %v463 = vld [vmem:[#allocation5 + $0x44] sm:$0xf]
        %v464 = vld [vmem:[#allocation5 + $0x48] sm:$0xf]
        %v465 = vld [vmem:[#allocation5 + $0x4c] sm:$0xf]
        %v466 = vld [vmem:[#allocation5 + $0x50] sm:$0xf]
        %v467 = vld [vmem:[#allocation5 + $0x54] sm:$0xf]
        %v468 = vld [vmem:[#allocation5 + $0x58] sm:$0xf]
        %v469 = vld [vmem:[#allocation5 + $0x5c] sm:$0xf]
        %v470 = vld [vmem:[#allocation5 + $0x60] sm:$0xf]
        %v471 = vld [vmem:[#allocation5 + $0x64] sm:$0xf]
        %v472 = vld [vmem:[#allocation5 + $0x68] sm:$0xf]
        %v473 = vld [vmem:[#allocation5 + $0x6c] sm:$0xf]
        %v474 = vld [vmem:[#allocation5 + $0x70] sm:$0xf]
        %v475 = vld [vmem:[#allocation5 + $0x74] sm:$0xf]
        %v476 = vld [vmem:[#allocation5 + $0x78] sm:$0xf]
        %v477 = vld [vmem:[#allocation5 + $0x7c] sm:$0xf]
        %v478 = vld [vmem:[#allocation5 + $0x80] sm:$0xf]
        %v479 = vld [vmem:[#allocation5 + $0x84] sm:$0xf]
        %v480 = vld [vmem:[#allocation5 + $0x88] sm:$0xf]
        %v481 = vld [vmem:[#allocation5 + $0x8c] sm:$0xf]
        %v482 = vld [vmem:[#allocation5 + $0x90] sm:$0xf]
        %v483 = vld [vmem:[#allocation5 + $0x94] sm:$0xf]
        %v484 = vld [vmem:[#allocation5 + $0x98] sm:$0xf]
        %v485 = vld [vmem:[#allocation5 + $0x9c] sm:$0xf]
        %v486 = vld [vmem:[#allocation5 + $0xa0] sm:$0xf]
        %v487 = vld [vmem:[#allocation5 + $0xa4] sm:$0xf]
        %v488 = vld [vmem:[#allocation5 + $0xa8] sm:$0xf]
        %v489 = vld [vmem:[#allocation5 + $0xac] sm:$0xf]
        %v490 = vld [vmem:[#allocation5 + $0xb0] sm:$0xf]
        %v491 = vld [vmem:[#allocation5 + $0xb4] sm:$0xf]
        %v492 = vld [vmem:[#allocation5 + $0xb8] sm:$0xf]
        %v493 = vld [vmem:[#allocation5 + $0xbc] sm:$0xf]
        %v494 = vld [vmem:[#allocation5 + $0xc0] sm:$0xf]
        %v495 = vld [vmem:[#allocation5 + $0xc4] sm:$0xf]
        %v496 = vld [vmem:[#allocation5 + $0xc8] sm:$0xf]
        %v497 = vld [vmem:[#allocation5 + $0xcc] sm:$0xf]
        %v498 = vld [vmem:[#allocation5 + $0xd0] sm:$0xf]
        %v499 = vld [vmem:[#allocation5 + $0xd4] sm:$0xf]
        %v500 = vld [vmem:[#allocation5 + $0xd8] sm:$0xf]
        %v501 = vld [vmem:[#allocation5 + $0xdc] sm:$0xf]
        %v502 = vld [vmem:[#allocation5 + $0xe0] sm:$0xf]
        %v503 = vld [vmem:[#allocation5 + $0xe4] sm:$0xf]
        %v504 = vld [vmem:[#allocation5 + $0xe8] sm:$0xf]
        %v505 = vld [vmem:[#allocation5 + $0xec] sm:$0xf]
        %v506 = vld [vmem:[#allocation5 + $0xf0] sm:$0xf]
        %v507 = vld [vmem:[#allocation5 + $0xf4] sm:$0xf]
        %v508 = vld [vmem:[#allocation5 + $0xf8] sm:$0xf]
        %v509 = vld [vmem:[#allocation5 + $0xfc] sm:$0xf]
        %v574 = vunpack.c.l.b16 %v382
        %v575 = vunpack.c.h.b16 %v382
        %v576 = vunpack.c.l.b16 %v383
        %v577 = vunpack.c.h.b16 %v383
        %v578 = vunpack.c.l.b16 %v384
        %v579 = vunpack.c.h.b16 %v384
        %v580 = vunpack.c.l.b16 %v385
        %v581 = vunpack.c.h.b16 %v385
        %v582 = vunpack.c.l.b16 %v386
        %v583 = vunpack.c.h.b16 %v386
        %v584 = vunpack.c.l.b16 %v387
        %v585 = vunpack.c.h.b16 %v387
        %v586 = vunpack.c.l.b16 %v388
        %v587 = vunpack.c.h.b16 %v388
        %v588 = vunpack.c.l.b16 %v389
        %v589 = vunpack.c.h.b16 %v389
        %v590 = vunpack.c.l.b16 %v390
        %v591 = vunpack.c.h.b16 %v390
        %v592 = vunpack.c.l.b16 %v391
        %v593 = vunpack.c.h.b16 %v391
        %v594 = vunpack.c.l.b16 %v392
        %v595 = vunpack.c.h.b16 %v392
        %v596 = vunpack.c.l.b16 %v393
        %v597 = vunpack.c.h.b16 %v393
        %v598 = vunpack.c.l.b16 %v394
        %v599 = vunpack.c.h.b16 %v394
        %v600 = vunpack.c.l.b16 %v395
        %v601 = vunpack.c.h.b16 %v395
        %v602 = vunpack.c.l.b16 %v396
        %v603 = vunpack.c.h.b16 %v396
        %v604 = vunpack.c.l.b16 %v397
        %v605 = vunpack.c.h.b16 %v397
        %v606 = vunpack.c.l.b16 %v398
        %v607 = vunpack.c.h.b16 %v398
        %v608 = vunpack.c.l.b16 %v399
        %v609 = vunpack.c.h.b16 %v399
        %v610 = vunpack.c.l.b16 %v400
        %v611 = vunpack.c.h.b16 %v400
        %v612 = vunpack.c.l.b16 %v401
        %v613 = vunpack.c.h.b16 %v401
        %v614 = vunpack.c.l.b16 %v402
        %v615 = vunpack.c.h.b16 %v402
        %v616 = vunpack.c.l.b16 %v403
        %v617 = vunpack.c.h.b16 %v403
        %v618 = vunpack.c.l.b16 %v404
        %v619 = vunpack.c.h.b16 %v404
        %v620 = vunpack.c.l.b16 %v405
        %v621 = vunpack.c.h.b16 %v405
        %v622 = vunpack.c.l.b16 %v406
        %v623 = vunpack.c.h.b16 %v406
        %v624 = vunpack.c.l.b16 %v407
        %v625 = vunpack.c.h.b16 %v407
        %v626 = vunpack.c.l.b16 %v408
        %v627 = vunpack.c.h.b16 %v408
        %v628 = vunpack.c.l.b16 %v409
        %v629 = vunpack.c.h.b16 %v409
        %v630 = vunpack.c.l.b16 %v410
        %v631 = vunpack.c.h.b16 %v410
        %v632 = vunpack.c.l.b16 %v411
        %v633 = vunpack.c.h.b16 %v411
        %v634 = vunpack.c.l.b16 %v412
        %v635 = vunpack.c.h.b16 %v412
        %v636 = vunpack.c.l.b16 %v413
        %v637 = vunpack.c.h.b16 %v413
        %v638 = vunpack.c.l.b16 %v414
        %v639 = vunpack.c.h.b16 %v414
        %v640 = vunpack.c.l.b16 %v415
        %v641 = vunpack.c.h.b16 %v415
        %v642 = vunpack.c.l.b16 %v416
        %v643 = vunpack.c.h.b16 %v416
        %v644 = vunpack.c.l.b16 %v417
        %v645 = vunpack.c.h.b16 %v417
        %v646 = vunpack.c.l.b16 %v418
        %v647 = vunpack.c.h.b16 %v418
        %v648 = vunpack.c.l.b16 %v419
        %v649 = vunpack.c.h.b16 %v419
        %v650 = vunpack.c.l.b16 %v420
        %v651 = vunpack.c.h.b16 %v420
        %v652 = vunpack.c.l.b16 %v421
        %v653 = vunpack.c.h.b16 %v421
        %v654 = vunpack.c.l.b16 %v422
        %v655 = vunpack.c.h.b16 %v422
        %v656 = vunpack.c.l.b16 %v423
        %v657 = vunpack.c.h.b16 %v423
        %v658 = vunpack.c.l.b16 %v424
        %v659 = vunpack.c.h.b16 %v424
        %v660 = vunpack.c.l.b16 %v425
        %v661 = vunpack.c.h.b16 %v425
        %v662 = vunpack.c.l.b16 %v426
        %v663 = vunpack.c.h.b16 %v426
        %v664 = vunpack.c.l.b16 %v427
        %v665 = vunpack.c.h.b16 %v427
        %v666 = vunpack.c.l.b16 %v428
        %v667 = vunpack.c.h.b16 %v428
        %v668 = vunpack.c.l.b16 %v429
        %v669 = vunpack.c.h.b16 %v429
        %v670 = vunpack.c.l.b16 %v430
        %v671 = vunpack.c.h.b16 %v430
        %v672 = vunpack.c.l.b16 %v431
        %v673 = vunpack.c.h.b16 %v431
        %v674 = vunpack.c.l.b16 %v432
        %v675 = vunpack.c.h.b16 %v432
        %v676 = vunpack.c.l.b16 %v433
        %v677 = vunpack.c.h.b16 %v433
        %v678 = vunpack.c.l.b16 %v434
        %v679 = vunpack.c.h.b16 %v434
        %v680 = vunpack.c.l.b16 %v435
        %v681 = vunpack.c.h.b16 %v435
        %v682 = vunpack.c.l.b16 %v436
        %v683 = vunpack.c.h.b16 %v436
        %v684 = vunpack.c.l.b16 %v437
        %v685 = vunpack.c.h.b16 %v437
        %v686 = vunpack.c.l.b16 %v438
        %v687 = vunpack.c.h.b16 %v438
        %v688 = vunpack.c.l.b16 %v439
        %v689 = vunpack.c.h.b16 %v439
        %v690 = vunpack.c.l.b16 %v440
        %v691 = vunpack.c.h.b16 %v440
        %v692 = vunpack.c.l.b16 %v441
        %v693 = vunpack.c.h.b16 %v441
        %v694 = vunpack.c.l.b16 %v442
        %v695 = vunpack.c.h.b16 %v442
        %v696 = vunpack.c.l.b16 %v443
        %v697 = vunpack.c.h.b16 %v443
        %v698 = vunpack.c.l.b16 %v444
        %v699 = vunpack.c.h.b16 %v444
        %v700 = vunpack.c.l.b16 %v445
        %v701 = vunpack.c.h.b16 %v445
        %v702 = vpack.c.b16 %v578, %v574
        %v703 = vpack.c.b16 %v579, %v575
        %v704 = vpack.c.b16 %v580, %v576
        %v705 = vpack.c.b16 %v581, %v577
        %v706 = vpack.c.b16 %v586, %v582
        %v707 = vpack.c.b16 %v587, %v583
        %v708 = vpack.c.b16 %v588, %v584
        %v709 = vpack.c.b16 %v589, %v585
        %v710 = vpack.c.b16 %v594, %v590
        %v711 = vpack.c.b16 %v595, %v591
        %v712 = vpack.c.b16 %v596, %v592
        %v713 = vpack.c.b16 %v597, %v593
        %v714 = vpack.c.b16 %v602, %v598
        %v715 = vpack.c.b16 %v603, %v599
        %v716 = vpack.c.b16 %v604, %v600
        %v717 = vpack.c.b16 %v605, %v601
        %v718 = vpack.c.b16 %v610, %v606
        %v719 = vpack.c.b16 %v611, %v607
        %v720 = vpack.c.b16 %v612, %v608
        %v721 = vpack.c.b16 %v613, %v609
        %v722 = vpack.c.b16 %v618, %v614
        %v723 = vpack.c.b16 %v619, %v615
        %v724 = vpack.c.b16 %v620, %v616
        %v725 = vpack.c.b16 %v621, %v617
        %v726 = vpack.c.b16 %v626, %v622
        %v727 = vpack.c.b16 %v627, %v623
        %v728 = vpack.c.b16 %v628, %v624
        %v729 = vpack.c.b16 %v629, %v625
        %v730 = vpack.c.b16 %v634, %v630
        %v731 = vpack.c.b16 %v635, %v631
        %v732 = vpack.c.b16 %v636, %v632
        %v733 = vpack.c.b16 %v637, %v633
        %v734 = vpack.c.b16 %v642, %v638
        %v735 = vpack.c.b16 %v643, %v639
        %v736 = vpack.c.b16 %v644, %v640
        %v737 = vpack.c.b16 %v645, %v641
        %v738 = vpack.c.b16 %v650, %v646
        %v739 = vpack.c.b16 %v651, %v647
        %v740 = vpack.c.b16 %v652, %v648
        %v741 = vpack.c.b16 %v653, %v649
        %v742 = vpack.c.b16 %v658, %v654
        %v743 = vpack.c.b16 %v659, %v655
        %v744 = vpack.c.b16 %v660, %v656
        %v745 = vpack.c.b16 %v661, %v657
        %v746 = vpack.c.b16 %v666, %v662
        %v747 = vpack.c.b16 %v667, %v663
        %v748 = vpack.c.b16 %v668, %v664
        %v749 = vpack.c.b16 %v669, %v665
        %v750 = vpack.c.b16 %v674, %v670
        %v751 = vpack.c.b16 %v675, %v671
        %v752 = vpack.c.b16 %v676, %v672
        %v753 = vpack.c.b16 %v677, %v673
        %v754 = vpack.c.b16 %v682, %v678
        %v755 = vpack.c.b16 %v683, %v679
        %v756 = vpack.c.b16 %v684, %v680
        %v757 = vpack.c.b16 %v685, %v681
        %v758 = vpack.c.b16 %v690, %v686
        %v759 = vpack.c.b16 %v691, %v687
        %v760 = vpack.c.b16 %v692, %v688
        %v761 = vpack.c.b16 %v693, %v689
        %v762 = vpack.c.b16 %v698, %v694
        %v763 = vpack.c.b16 %v699, %v695
        %v764 = vpack.c.b16 %v700, %v696
        %v765 = vpack.c.b16 %v701, %v697
        %v894 = vunpack.c.l.b16 %v446
        %v895 = vunpack.c.l.b16 %v447
        %v896 = vunpack.c.l.b16 %v448
        %v897 = vunpack.c.l.b16 %v449
        %v898 = vunpack.c.l.b16 %v450
        %v899 = vunpack.c.l.b16 %v451
        %v900 = vunpack.c.l.b16 %v452
        %v901 = vunpack.c.l.b16 %v453
        %v902 = vunpack.c.l.b16 %v454
        %v903 = vunpack.c.l.b16 %v455
        %v904 = vunpack.c.l.b16 %v456
        %v905 = vunpack.c.l.b16 %v457
        %v906 = vunpack.c.l.b16 %v458
        %v907 = vunpack.c.l.b16 %v459
        %v908 = vunpack.c.l.b16 %v460
        %v909 = vunpack.c.l.b16 %v461
        %v910 = vunpack.c.l.b16 %v462
        %v911 = vunpack.c.l.b16 %v463
        %v912 = vunpack.c.l.b16 %v464
        %v913 = vunpack.c.l.b16 %v465
        %v914 = vunpack.c.l.b16 %v466
        %v915 = vunpack.c.l.b16 %v467
        %v916 = vunpack.c.l.b16 %v468
        %v917 = vunpack.c.l.b16 %v469
        %v918 = vunpack.c.l.b16 %v470
        %v919 = vunpack.c.l.b16 %v471
        %v920 = vunpack.c.l.b16 %v472
        %v921 = vunpack.c.l.b16 %v473
        %v922 = vunpack.c.l.b16 %v474
        %v923 = vunpack.c.l.b16 %v475
        %v924 = vunpack.c.l.b16 %v476
        %v925 = vunpack.c.l.b16 %v477
        %v926 = vunpack.c.l.b16 %v478
        %v927 = vunpack.c.l.b16 %v479
        %v928 = vunpack.c.l.b16 %v480
        %v929 = vunpack.c.l.b16 %v481
        %v930 = vunpack.c.l.b16 %v482
        %v931 = vunpack.c.l.b16 %v483
        %v932 = vunpack.c.l.b16 %v484
        %v933 = vunpack.c.l.b16 %v485
        %v934 = vunpack.c.l.b16 %v486
        %v935 = vunpack.c.l.b16 %v487
        %v936 = vunpack.c.l.b16 %v488
        %v937 = vunpack.c.l.b16 %v489
        %v938 = vunpack.c.l.b16 %v490
        %v939 = vunpack.c.l.b16 %v491
        %v940 = vunpack.c.l.b16 %v492
        %v941 = vunpack.c.l.b16 %v493
        %v942 = vunpack.c.l.b16 %v494
        %v943 = vunpack.c.l.b16 %v495
        %v944 = vunpack.c.l.b16 %v496
        %v945 = vunpack.c.l.b16 %v497
        %v946 = vunpack.c.l.b16 %v498
        %v947 = vunpack.c.l.b16 %v499
        %v948 = vunpack.c.l.b16 %v500
        %v949 = vunpack.c.l.b16 %v501
        %v950 = vunpack.c.l.b16 %v502
        %v951 = vunpack.c.l.b16 %v503
        %v952 = vunpack.c.l.b16 %v504
        %v953 = vunpack.c.l.b16 %v505
        %v954 = vunpack.c.l.b16 %v506
        %v955 = vunpack.c.l.b16 %v507
        %v956 = vunpack.c.l.b16 %v508
        %v957 = vunpack.c.l.b16 %v509
        %v958 = vpack.c.b16 %v895, %v894
        %v959 = vpack.c.b16 %v897, %v896
        %v960 = vpack.c.b16 %v899, %v898
        %v961 = vpack.c.b16 %v901, %v900
        %v962 = vpack.c.b16 %v903, %v902
        %v963 = vpack.c.b16 %v905, %v904
        %v964 = vpack.c.b16 %v907, %v906
        %v965 = vpack.c.b16 %v909, %v908
        %v966 = vpack.c.b16 %v911, %v910
        %v967 = vpack.c.b16 %v913, %v912
        %v968 = vpack.c.b16 %v915, %v914
        %v969 = vpack.c.b16 %v917, %v916
        %v970 = vpack.c.b16 %v919, %v918
        %v971 = vpack.c.b16 %v921, %v920
        %v972 = vpack.c.b16 %v923, %v922
        %v973 = vpack.c.b16 %v925, %v924
        %v974 = vpack.c.b16 %v927, %v926
        %v975 = vpack.c.b16 %v929, %v928
        %v976 = vpack.c.b16 %v931, %v930
        %v977 = vpack.c.b16 %v933, %v932
        %v978 = vpack.c.b16 %v935, %v934
        %v979 = vpack.c.b16 %v937, %v936
        %v980 = vpack.c.b16 %v939, %v938
        %v981 = vpack.c.b16 %v941, %v940
        %v982 = vpack.c.b16 %v943, %v942
        %v983 = vpack.c.b16 %v945, %v944
        %v984 = vpack.c.b16 %v947, %v946
        %v985 = vpack.c.b16 %v949, %v948
        %v986 = vpack.c.b16 %v951, %v950
        %v987 = vpack.c.b16 %v953, %v952
        %v988 = vpack.c.b16 %v955, %v954
        %v989 = vpack.c.b16 %v957, %v956
        %1022 = vmatprep.subr.bf16.mxu0 0
        %1023 = vmatpush1.bf16.msra.mxu0 %v958
        %1024 = vmatprep.subr.bf16.mxu0 0
        %1025 = vmatpush1.bf16.msra.mxu0 %v959
        %1026 = vmatprep.subr.bf16.mxu0 0
        %1027 = vmatpush1.bf16.msra.mxu0 %v960
        %1028 = vmatprep.subr.bf16.mxu0 0
        %1029 = vmatpush1.bf16.msra.mxu0 %v961
        %1030 = vmatprep.subr.bf16.mxu0 0
        %1031 = vmatpush1.bf16.msra.mxu0 %v962
        %1032 = vmatprep.subr.bf16.mxu0 0
        %1033 = vmatpush1.bf16.msra.mxu0 %v963
        %1034 = vmatprep.subr.bf16.mxu0 0
        %1035 = vmatpush1.bf16.msra.mxu0 %v964
        %1036 = vmatprep.subr.bf16.mxu0 0
        %1037 = vmatpush1.bf16.msra.mxu0 %v965
        %1038 = vmatprep.subr.bf16.mxu0 0
        %1039 = vmatpush1.bf16.msra.mxu0 %v966
        %1040 = vmatprep.subr.bf16.mxu0 0
        %1041 = vmatpush1.bf16.msra.mxu0 %v967
        %1042 = vmatprep.subr.bf16.mxu0 0
        %1043 = vmatpush1.bf16.msra.mxu0 %v968
        %1044 = vmatprep.subr.bf16.mxu0 0
        %1045 = vmatpush1.bf16.msra.mxu0 %v969
        %1046 = vmatprep.subr.bf16.mxu0 0
        %1047 = vmatpush1.bf16.msra.mxu0 %v970
        %1048 = vmatprep.subr.bf16.mxu0 0
        %1049 = vmatpush1.bf16.msra.mxu0 %v971
        %1050 = vmatprep.subr.bf16.mxu0 0
        %1051 = vmatpush1.bf16.msra.mxu0 %v972
        %1052 = vmatprep.subr.bf16.mxu0 0
        %1053 = vmatpush1.bf16.msra.mxu0 %v973
        %1054 = vmatprep.mubr.bf16.mxu0 %v703
        %1055 = vmatmul.mubr.bf16.gmra.mrb[0].mxu0 %v702
        %v1056 = vpop.f32.mrb[0].mxu0
        %v1057 = vadd.f32 0.0, %v1056
        %v1058 = vpop.f32.mrb[0].mxu0
        %v1059 = vpop.f32.mrb[0].mxu0
        %v1060 = vadd.f32 0.0, %v1059
        %v1061 = vpop.f32.mrb[0].mxu0
        %1062 = vmatprep.mubr.bf16.mxu0 %v707
        %1063 = vmatmul.mubr.bf16.gmra.mrb[0].mxu0 %v706
        %v1064 = vpop.f32.mrb[0].mxu0
        %v1065 = vadd.f32 0.0, %v1064
        %v1066 = vpop.f32.mrb[0].mxu0
        %v1067 = vpop.f32.mrb[0].mxu0
        %v1068 = vadd.f32 0.0, %v1067
        %v1069 = vpop.f32.mrb[0].mxu0
        %1070 = vmatprep.mubr.bf16.mxu0 %v711
        %1071 = vmatmul.mubr.bf16.gmra.mrb[0].mxu0 %v710
        %v1072 = vpop.f32.mrb[0].mxu0
        %v1073 = vadd.f32 0.0, %v1072
        %v1074 = vpop.f32.mrb[0].mxu0
        %v1075 = vpop.f32.mrb[0].mxu0
        %v1076 = vadd.f32 0.0, %v1075
        %v1077 = vpop.f32.mrb[0].mxu0
        %1078 = vmatprep.mubr.bf16.mxu0 %v715
        %1079 = vmatmul.mubr.bf16.gmra.mrb[0].mxu0 %v714
        %v1080 = vpop.f32.mrb[0].mxu0
        %v1081 = vadd.f32 0.0, %v1080
        %v1082 = vpop.f32.mrb[0].mxu0
        %v1083 = vpop.f32.mrb[0].mxu0
        %v1084 = vadd.f32 0.0, %v1083
        %v1085 = vpop.f32.mrb[0].mxu0
        %1086 = vmatprep.mubr.bf16.mxu0 %v719
        %1087 = vmatmul.mubr.bf16.gmra.mrb[0].mxu0 %v718
        %v1088 = vpop.f32.mrb[0].mxu0
        %v1089 = vadd.f32 0.0, %v1088
        %v1090 = vpop.f32.mrb[0].mxu0
        %v1091 = vpop.f32.mrb[0].mxu0
        %v1092 = vadd.f32 0.0, %v1091
        %v1093 = vpop.f32.mrb[0].mxu0
        %1094 = vmatprep.mubr.bf16.mxu0 %v723
        %1095 = vmatmul.mubr.bf16.gmra.mrb[0].mxu0 %v722
        %v1096 = vpop.f32.mrb[0].mxu0
        %v1097 = vadd.f32 0.0, %v1096
        %v1098 = vpop.f32.mrb[0].mxu0
        %v1099 = vpop.f32.mrb[0].mxu0
        %v1100 = vadd.f32 0.0, %v1099
        %v1101 = vpop.f32.mrb[0].mxu0
        %1102 = vmatprep.mubr.bf16.mxu0 %v727
        %1103 = vmatmul.mubr.bf16.gmra.mrb[0].mxu0 %v726
        %v1104 = vpop.f32.mrb[0].mxu0
        %v1105 = vadd.f32 0.0, %v1104
        %v1106 = vpop.f32.mrb[0].mxu0
        %v1107 = vpop.f32.mrb[0].mxu0
        %v1108 = vadd.f32 0.0, %v1107
        %v1109 = vpop.f32.mrb[0].mxu0
        %1110 = vmatprep.mubr.bf16.mxu0 %v731
        %1111 = vmatmul.mubr.bf16.gmra.mrb[0].mxu0 %v730
        %v1112 = vpop.f32.mrb[0].mxu0
        %v1113 = vadd.f32 0.0, %v1112
        %v1114 = vpop.f32.mrb[0].mxu0
        %v1115 = vpop.f32.mrb[0].mxu0
        %v1116 = vadd.f32 0.0, %v1115
        %v1117 = vpop.f32.mrb[0].mxu0
        %1118 = vmatprep.mubr.bf16.mxu0 %v735
        %1119 = vmatmul.mubr.bf16.gmra.mrb[0].mxu0 %v734
        %v1120 = vpop.f32.mrb[0].mxu0
        %v1121 = vadd.f32 0.0, %v1120
        %v1122 = vpop.f32.mrb[0].mxu0
        %v1123 = vpop.f32.mrb[0].mxu0
        %v1124 = vadd.f32 0.0, %v1123
        %v1125 = vpop.f32.mrb[0].mxu0
        %1126 = vmatprep.mubr.bf16.mxu0 %v739
        %1127 = vmatmul.mubr.bf16.gmra.mrb[0].mxu0 %v738
        %v1128 = vpop.f32.mrb[0].mxu0
        %v1129 = vadd.f32 0.0, %v1128
        %v1130 = vpop.f32.mrb[0].mxu0
        %v1131 = vpop.f32.mrb[0].mxu0
        %v1132 = vadd.f32 0.0, %v1131
        %v1133 = vpop.f32.mrb[0].mxu0
        %1134 = vmatprep.mubr.bf16.mxu0 %v743
        %1135 = vmatmul.mubr.bf16.gmra.mrb[0].mxu0 %v742
        %v1136 = vpop.f32.mrb[0].mxu0
        %v1137 = vadd.f32 0.0, %v1136
        %v1138 = vpop.f32.mrb[0].mxu0
        %v1139 = vpop.f32.mrb[0].mxu0
        %v1140 = vadd.f32 0.0, %v1139
        %v1141 = vpop.f32.mrb[0].mxu0
        %1142 = vmatprep.mubr.bf16.mxu0 %v747
        %1143 = vmatmul.mubr.bf16.gmra.mrb[0].mxu0 %v746
        %v1144 = vpop.f32.mrb[0].mxu0
        %v1145 = vadd.f32 0.0, %v1144
        %v1146 = vpop.f32.mrb[0].mxu0
        %v1147 = vpop.f32.mrb[0].mxu0
        %v1148 = vadd.f32 0.0, %v1147
        %v1149 = vpop.f32.mrb[0].mxu0
        %1150 = vmatprep.mubr.bf16.mxu0 %v751
        %1151 = vmatmul.mubr.bf16.gmra.mrb[0].mxu0 %v750
        %v1152 = vpop.f32.mrb[0].mxu0
        %v1153 = vadd.f32 0.0, %v1152
        %v1154 = vpop.f32.mrb[0].mxu0
        %v1155 = vpop.f32.mrb[0].mxu0
        %v1156 = vadd.f32 0.0, %v1155
        %v1157 = vpop.f32.mrb[0].mxu0
        %1158 = vmatprep.mubr.bf16.mxu0 %v755
        %1159 = vmatmul.mubr.bf16.gmra.mrb[0].mxu0 %v754
        %v1160 = vpop.f32.mrb[0].mxu0
        %v1161 = vadd.f32 0.0, %v1160
        %v1162 = vpop.f32.mrb[0].mxu0
        %v1163 = vpop.f32.mrb[0].mxu0
        %v1164 = vadd.f32 0.0, %v1163
        %v1165 = vpop.f32.mrb[0].mxu0
        %1166 = vmatprep.mubr.bf16.mxu0 %v759
        %1167 = vmatmul.mubr.bf16.gmra.mrb[0].mxu0 %v758
        %v1168 = vpop.f32.mrb[0].mxu0
        %v1169 = vadd.f32 0.0, %v1168
        %v1170 = vpop.f32.mrb[0].mxu0
        %v1171 = vpop.f32.mrb[0].mxu0
        %v1172 = vadd.f32 0.0, %v1171
        %v1173 = vpop.f32.mrb[0].mxu0
        %1174 = vmatprep.mubr.bf16.mxu0 %v763
        %1175 = vmatmul.mubr.bf16.gmra.mrb[0].mxu0 %v762
        %v1176 = vpop.f32.mrb[0].mxu0
        %v1177 = vadd.f32 0.0, %v1176
        %v1178 = vpop.f32.mrb[0].mxu0
        %v1179 = vpop.f32.mrb[0].mxu0
        %v1180 = vadd.f32 0.0, %v1179
        %v1181 = vpop.f32.mrb[0].mxu0
        %1182 = vdwg.mxu0
        %1183 = vmatprep.subr.bf16.mxu0 0
        %1184 = vmatpush1.bf16.msra.mxu0 %v974
        %1185 = vmatprep.subr.bf16.mxu0 0
        %1186 = vmatpush1.bf16.msra.mxu0 %v975
        %1187 = vmatprep.subr.bf16.mxu0 0
        %1188 = vmatpush1.bf16.msra.mxu0 %v976
        %1189 = vmatprep.subr.bf16.mxu0 0
        %1190 = vmatpush1.bf16.msra.mxu0 %v977
        %1191 = vmatprep.subr.bf16.mxu0 0
        %1192 = vmatpush1.bf16.msra.mxu0 %v978
        %1193 = vmatprep.subr.bf16.mxu0 0
        %1194 = vmatpush1.bf16.msra.mxu0 %v979
        %1195 = vmatprep.subr.bf16.mxu0 0
        %1196 = vmatpush1.bf16.msra.mxu0 %v980
        %1197 = vmatprep.subr.bf16.mxu0 0
        %1198 = vmatpush1.bf16.msra.mxu0 %v981
        %1199 = vmatprep.subr.bf16.mxu0 0
        %1200 = vmatpush1.bf16.msra.mxu0 %v982
        %1201 = vmatprep.subr.bf16.mxu0 0
        %1202 = vmatpush1.bf16.msra.mxu0 %v983
        %1203 = vmatprep.subr.bf16.mxu0 0
        %1204 = vmatpush1.bf16.msra.mxu0 %v984
        %1205 = vmatprep.subr.bf16.mxu0 0
        %1206 = vmatpush1.bf16.msra.mxu0 %v985
        %1207 = vmatprep.subr.bf16.mxu0 0
        %1208 = vmatpush1.bf16.msra.mxu0 %v986
        %1209 = vmatprep.subr.bf16.mxu0 0
        %1210 = vmatpush1.bf16.msra.mxu0 %v987
        %1211 = vmatprep.subr.bf16.mxu0 0
        %1212 = vmatpush1.bf16.msra.mxu0 %v988
        %1213 = vmatprep.subr.bf16.mxu0 0
        %1214 = vmatpush1.bf16.msra.mxu0 %v989
        %1215 = vmatprep.mubr.bf16.mxu0 %v705
        %1216 = vmatmul.mubr.bf16.gmra.mrb[0].mxu0 %v704
        %v1217 = vpop.f32.mrb[0].mxu0
        %v1218 = vadd.f32 %v1057, %v1217
        %v1219 = vpop.f32.mrb[0].mxu0
        %v1220 = vpop.f32.mrb[0].mxu0
        %v1221 = vadd.f32 %v1060, %v1220
        %v1222 = vpop.f32.mrb[0].mxu0
        %1223 = vmatprep.mubr.bf16.mxu0 %v709
        %1224 = vmatmul.mubr.bf16.gmra.mrb[0].mxu0 %v708
        %v1225 = vpop.f32.mrb[0].mxu0
        %v1226 = vadd.f32 %v1065, %v1225
        %v1227 = vpop.f32.mrb[0].mxu0
        %v1228 = vpop.f32.mrb[0].mxu0
        %v1229 = vadd.f32 %v1068, %v1228
        %v1230 = vpop.f32.mrb[0].mxu0
        %1231 = vmatprep.mubr.bf16.mxu0 %v713
        %1232 = vmatmul.mubr.bf16.gmra.mrb[0].mxu0 %v712
        %v1233 = vpop.f32.mrb[0].mxu0
        %v1234 = vadd.f32 %v1073, %v1233
        %v1235 = vpop.f32.mrb[0].mxu0
        %v1236 = vpop.f32.mrb[0].mxu0
        %v1237 = vadd.f32 %v1076, %v1236
        %v1238 = vpop.f32.mrb[0].mxu0
        %1239 = vmatprep.mubr.bf16.mxu0 %v717
        %1240 = vmatmul.mubr.bf16.gmra.mrb[0].mxu0 %v716
        %v1241 = vpop.f32.mrb[0].mxu0
        %v1242 = vadd.f32 %v1081, %v1241
        %v1243 = vpop.f32.mrb[0].mxu0
        %v1244 = vpop.f32.mrb[0].mxu0
        %v1245 = vadd.f32 %v1084, %v1244
        %v1246 = vpop.f32.mrb[0].mxu0
        %1247 = vmatprep.mubr.bf16.mxu0 %v721
        %1248 = vmatmul.mubr.bf16.gmra.mrb[0].mxu0 %v720
        %v1249 = vpop.f32.mrb[0].mxu0
        %v1250 = vadd.f32 %v1089, %v1249
        %v1251 = vpop.f32.mrb[0].mxu0
        %v1252 = vpop.f32.mrb[0].mxu0
        %v1253 = vadd.f32 %v1092, %v1252
        %v1254 = vpop.f32.mrb[0].mxu0
        %1255 = vmatprep.mubr.bf16.mxu0 %v725
        %1256 = vmatmul.mubr.bf16.gmra.mrb[0].mxu0 %v724
        %v1257 = vpop.f32.mrb[0].mxu0
        %v1258 = vadd.f32 %v1097, %v1257
        %v1259 = vpop.f32.mrb[0].mxu0
        %v1260 = vpop.f32.mrb[0].mxu0
        %v1261 = vadd.f32 %v1100, %v1260
        %v1262 = vpop.f32.mrb[0].mxu0
        %1263 = vmatprep.mubr.bf16.mxu0 %v729
        %1264 = vmatmul.mubr.bf16.gmra.mrb[0].mxu0 %v728
        %v1265 = vpop.f32.mrb[0].mxu0
        %v1266 = vadd.f32 %v1105, %v1265
        %v1267 = vpop.f32.mrb[0].mxu0
        %v1268 = vpop.f32.mrb[0].mxu0
        %v1269 = vadd.f32 %v1108, %v1268
        %v1270 = vpop.f32.mrb[0].mxu0
        %1271 = vmatprep.mubr.bf16.mxu0 %v733
        %1272 = vmatmul.mubr.bf16.gmra.mrb[0].mxu0 %v732
        %v1273 = vpop.f32.mrb[0].mxu0
        %v1274 = vadd.f32 %v1113, %v1273
        %v1275 = vpop.f32.mrb[0].mxu0
        %v1276 = vpop.f32.mrb[0].mxu0
        %v1277 = vadd.f32 %v1116, %v1276
        %v1278 = vpop.f32.mrb[0].mxu0
        %1279 = vmatprep.mubr.bf16.mxu0 %v737
        %1280 = vmatmul.mubr.bf16.gmra.mrb[0].mxu0 %v736
        %v1281 = vpop.f32.mrb[0].mxu0
        %v1282 = vadd.f32 %v1121, %v1281
        %v1283 = vpop.f32.mrb[0].mxu0
        %v1284 = vpop.f32.mrb[0].mxu0
        %v1285 = vadd.f32 %v1124, %v1284
        %v1286 = vpop.f32.mrb[0].mxu0
        %1287 = vmatprep.mubr.bf16.mxu0 %v741
        %1288 = vmatmul.mubr.bf16.gmra.mrb[0].mxu0 %v740
        %v1289 = vpop.f32.mrb[0].mxu0
        %v1290 = vadd.f32 %v1129, %v1289
        %v1291 = vpop.f32.mrb[0].mxu0
        %v1292 = vpop.f32.mrb[0].mxu0
        %v1293 = vadd.f32 %v1132, %v1292
        %v1294 = vpop.f32.mrb[0].mxu0
        %1295 = vmatprep.mubr.bf16.mxu0 %v745
        %1296 = vmatmul.mubr.bf16.gmra.mrb[0].mxu0 %v744
        %v1297 = vpop.f32.mrb[0].mxu0
        %v1298 = vadd.f32 %v1137, %v1297
        %v1299 = vpop.f32.mrb[0].mxu0
        %v1300 = vpop.f32.mrb[0].mxu0
        %v1301 = vadd.f32 %v1140, %v1300
        %v1302 = vpop.f32.mrb[0].mxu0
        %1303 = vmatprep.mubr.bf16.mxu0 %v749
        %1304 = vmatmul.mubr.bf16.gmra.mrb[0].mxu0 %v748
        %v1305 = vpop.f32.mrb[0].mxu0
        %v1306 = vadd.f32 %v1145, %v1305
        %v1307 = vpop.f32.mrb[0].mxu0
        %v1308 = vpop.f32.mrb[0].mxu0
        %v1309 = vadd.f32 %v1148, %v1308
        %v1310 = vpop.f32.mrb[0].mxu0
        %1311 = vmatprep.mubr.bf16.mxu0 %v753
        %1312 = vmatmul.mubr.bf16.gmra.mrb[0].mxu0 %v752
        %v1313 = vpop.f32.mrb[0].mxu0
        %v1314 = vadd.f32 %v1153, %v1313
        %v1315 = vpop.f32.mrb[0].mxu0
        %v1316 = vpop.f32.mrb[0].mxu0
        %v1317 = vadd.f32 %v1156, %v1316
        %v1318 = vpop.f32.mrb[0].mxu0
        %1319 = vmatprep.mubr.bf16.mxu0 %v757
        %1320 = vmatmul.mubr.bf16.gmra.mrb[0].mxu0 %v756
        %v1321 = vpop.f32.mrb[0].mxu0
        %v1322 = vadd.f32 %v1161, %v1321
        %v1323 = vpop.f32.mrb[0].mxu0
        %v1324 = vpop.f32.mrb[0].mxu0
        %v1325 = vadd.f32 %v1164, %v1324
        %v1326 = vpop.f32.mrb[0].mxu0
        %1327 = vmatprep.mubr.bf16.mxu0 %v761
        %1328 = vmatmul.mubr.bf16.gmra.mrb[0].mxu0 %v760
        %v1329 = vpop.f32.mrb[0].mxu0
        %v1330 = vadd.f32 %v1169, %v1329
        %v1331 = vpop.f32.mrb[0].mxu0
        %v1332 = vpop.f32.mrb[0].mxu0
        %v1333 = vadd.f32 %v1172, %v1332
        %v1334 = vpop.f32.mrb[0].mxu0
        %1335 = vmatprep.mubr.bf16.mxu0 %v765
        %1336 = vmatmul.mubr.bf16.gmra.mrb[0].mxu0 %v764
        %v1337 = vpop.f32.mrb[0].mxu0
        %v1338 = vadd.f32 %v1177, %v1337
        %v1339 = vpop.f32.mrb[0].mxu0
        %v1340 = vpop.f32.mrb[0].mxu0
        %v1341 = vadd.f32 %v1180, %v1340
        %v1342 = vpop.f32.mrb[0].mxu0
        %1343 = vdwg.mxu0
        %v1344 = vld [vmem:[%s325] sm:$0xf]
        %v1345 = vld [vmem:[%s325 + $0x4] sm:$0xf]
        %v1346 = vld [vmem:[%s325 + $0x8] sm:$0xf]
        %v1347 = vld [vmem:[%s325 + $0xc] sm:$0xf]
        %v1348 = vld [vmem:[%s325 + $0x10] sm:$0xf]
        %v1349 = vld [vmem:[%s325 + $0x14] sm:$0xf]
        %v1350 = vld [vmem:[%s325 + $0x18] sm:$0xf]
        %v1351 = vld [vmem:[%s325 + $0x1c] sm:$0xf]
        %v1352 = vld [vmem:[%s325 + $0x20] sm:$0xf]
        %v1353 = vld [vmem:[%s325 + $0x24] sm:$0xf]
        %v1354 = vld [vmem:[%s325 + $0x28] sm:$0xf]
        %v1355 = vld [vmem:[%s325 + $0x2c] sm:$0xf]
        %v1356 = vld [vmem:[%s325 + $0x30] sm:$0xf]
        %v1357 = vld [vmem:[%s325 + $0x34] sm:$0xf]
        %v1358 = vld [vmem:[%s325 + $0x38] sm:$0xf]
        %v1359 = vld [vmem:[%s325 + $0x3c] sm:$0xf]
        %v1360 = vld [vmem:[%s325 + $0x40] sm:$0xf]
        %v1361 = vld [vmem:[%s325 + $0x44] sm:$0xf]
        %v1362 = vld [vmem:[%s325 + $0x48] sm:$0xf]
        %v1363 = vld [vmem:[%s325 + $0x4c] sm:$0xf]
        %v1364 = vld [vmem:[%s325 + $0x50] sm:$0xf]
        %v1365 = vld [vmem:[%s325 + $0x54] sm:$0xf]
        %v1366 = vld [vmem:[%s325 + $0x58] sm:$0xf]
        %v1367 = vld [vmem:[%s325 + $0x5c] sm:$0xf]
        %v1368 = vld [vmem:[%s325 + $0x60] sm:$0xf]
        %v1369 = vld [vmem:[%s325 + $0x64] sm:$0xf]
        %v1370 = vld [vmem:[%s325 + $0x68] sm:$0xf]
        %v1371 = vld [vmem:[%s325 + $0x6c] sm:$0xf]
        %v1372 = vld [vmem:[%s325 + $0x70] sm:$0xf]
        %v1373 = vld [vmem:[%s325 + $0x74] sm:$0xf]
        %v1374 = vld [vmem:[%s325 + $0x78] sm:$0xf]
        %v1375 = vld [vmem:[%s325 + $0x7c] sm:$0xf]
        %v1376 = vpack.c.bf16 %v1221, %v1218
        %v1377 = vpack.c.bf16 %v1229, %v1226
        %v1378 = vpack.c.bf16 %v1237, %v1234
        %v1379 = vpack.c.bf16 %v1245, %v1242
        %v1380 = vpack.c.bf16 %v1253, %v1250
        %v1381 = vpack.c.bf16 %v1261, %v1258
        %v1382 = vpack.c.bf16 %v1269, %v1266
        %v1383 = vpack.c.bf16 %v1277, %v1274
        %v1384 = vpack.c.bf16 %v1285, %v1282
        %v1385 = vpack.c.bf16 %v1293, %v1290
        %v1386 = vpack.c.bf16 %v1301, %v1298
        %v1387 = vpack.c.bf16 %v1309, %v1306
        %v1388 = vpack.c.bf16 %v1317, %v1314
        %v1389 = vpack.c.bf16 %v1325, %v1322
        %v1390 = vpack.c.bf16 %v1333, %v1330
        %v1391 = vpack.c.bf16 %v1341, %v1338
        %v1424 = vunpack.c.l.b16 %v1344
        %v1425 = vunpack.c.l.b16 %v1345
        %v1426 = vunpack.c.l.b16 %v1346
        %v1427 = vunpack.c.l.b16 %v1347
        %v1428 = vunpack.c.l.b16 %v1348
        %v1429 = vunpack.c.l.b16 %v1349
        %v1430 = vunpack.c.l.b16 %v1350
        %v1431 = vunpack.c.l.b16 %v1351
        %v1432 = vunpack.c.l.b16 %v1352
        %v1433 = vunpack.c.l.b16 %v1353
        %v1434 = vunpack.c.l.b16 %v1354
        %v1435 = vunpack.c.l.b16 %v1355
        %v1436 = vunpack.c.l.b16 %v1356
        %v1437 = vunpack.c.l.b16 %v1357
        %v1438 = vunpack.c.l.b16 %v1358
        %v1439 = vunpack.c.l.b16 %v1359
        %v1440 = vunpack.c.l.b16 %v1360
        %v1441 = vunpack.c.l.b16 %v1361
        %v1442 = vunpack.c.l.b16 %v1362
        %v1443 = vunpack.c.l.b16 %v1363
        %v1444 = vunpack.c.l.b16 %v1364
        %v1445 = vunpack.c.l.b16 %v1365
        %v1446 = vunpack.c.l.b16 %v1366
        %v1447 = vunpack.c.l.b16 %v1367
        %v1448 = vunpack.c.l.b16 %v1368
        %v1449 = vunpack.c.l.b16 %v1369
        %v1450 = vunpack.c.l.b16 %v1370
        %v1451 = vunpack.c.l.b16 %v1371
        %v1452 = vunpack.c.l.b16 %v1372
        %v1453 = vunpack.c.l.b16 %v1373
        %v1454 = vunpack.c.l.b16 %v1374
        %v1455 = vunpack.c.l.b16 %v1375
        %v1456 = vpack.c.b16 %v1425, %v1424
        %v1457 = vpack.c.b16 %v1427, %v1426
        %v1458 = vpack.c.b16 %v1429, %v1428
        %v1459 = vpack.c.b16 %v1431, %v1430
        %v1460 = vpack.c.b16 %v1433, %v1432
        %v1461 = vpack.c.b16 %v1435, %v1434
        %v1462 = vpack.c.b16 %v1437, %v1436
        %v1463 = vpack.c.b16 %v1439, %v1438
        %v1464 = vpack.c.b16 %v1441, %v1440
        %v1465 = vpack.c.b16 %v1443, %v1442
        %v1466 = vpack.c.b16 %v1445, %v1444
        %v1467 = vpack.c.b16 %v1447, %v1446
        %v1468 = vpack.c.b16 %v1449, %v1448
        %v1469 = vpack.c.b16 %v1451, %v1450
        %v1470 = vpack.c.b16 %v1453, %v1452
        %v1471 = vpack.c.b16 %v1455, %v1454
        %v1488 = vld [vmem:[#allocation8] sm:$0xf]
        %v1489 = vld [vmem:[#allocation8 + $0x4] sm:$0xf]
        %v1490 = vld [vmem:[#allocation8 + $0x8] sm:$0xf]
        %v1491 = vld [vmem:[#allocation8 + $0xc] sm:$0xf]
        %v1492 = vld [vmem:[#allocation8 + $0x10] sm:$0xf]
        %v1493 = vld [vmem:[#allocation8 + $0x14] sm:$0xf]
        %v1494 = vld [vmem:[#allocation8 + $0x18] sm:$0xf]
        %v1495 = vld [vmem:[#allocation8 + $0x1c] sm:$0xf]
        %v1496 = vld [vmem:[#allocation8 + $0x20] sm:$0xf]
        %v1497 = vld [vmem:[#allocation8 + $0x24] sm:$0xf]
        %v1498 = vld [vmem:[#allocation8 + $0x28] sm:$0xf]
        %v1499 = vld [vmem:[#allocation8 + $0x2c] sm:$0xf]
        %v1500 = vld [vmem:[#allocation8 + $0x30] sm:$0xf]
        %v1501 = vld [vmem:[#allocation8 + $0x34] sm:$0xf]
        %v1502 = vld [vmem:[#allocation8 + $0x38] sm:$0xf]
        %v1503 = vld [vmem:[#allocation8 + $0x3c] sm:$0xf]
        %v1504 = vld [vmem:[#allocation8 + $0x40] sm:$0xf]
        %v1505 = vld [vmem:[#allocation8 + $0x44] sm:$0xf]
        %v1506 = vld [vmem:[#allocation8 + $0x48] sm:$0xf]
        %v1507 = vld [vmem:[#allocation8 + $0x4c] sm:$0xf]
        %v1508 = vld [vmem:[#allocation8 + $0x50] sm:$0xf]
        %v1509 = vld [vmem:[#allocation8 + $0x54] sm:$0xf]
        %v1510 = vld [vmem:[#allocation8 + $0x58] sm:$0xf]
        %v1511 = vld [vmem:[#allocation8 + $0x5c] sm:$0xf]
        %v1512 = vld [vmem:[#allocation8 + $0x60] sm:$0xf]
        %v1513 = vld [vmem:[#allocation8 + $0x64] sm:$0xf]
        %v1514 = vld [vmem:[#allocation8 + $0x68] sm:$0xf]
        %v1515 = vld [vmem:[#allocation8 + $0x6c] sm:$0xf]
        %v1516 = vld [vmem:[#allocation8 + $0x70] sm:$0xf]
        %v1517 = vld [vmem:[#allocation8 + $0x74] sm:$0xf]
        %v1518 = vld [vmem:[#allocation8 + $0x78] sm:$0xf]
        %v1519 = vld [vmem:[#allocation8 + $0x7c] sm:$0xf]
        %v1520 = vld [vmem:[%s4] sm:$0x1]
        %v1522 = vlaneseq
        %v1523 = vshrl.u32 %v1522, 7
        %v1524 = vsub.s32 0, %v1523
        %v1525 = vrot.slane %v1520, %v1524
        %v1559 = vunpack.c.l.b16 %v1488
        %v1560 = vunpack.c.l.b16 %v1489
        %v1561 = vunpack.c.l.b16 %v1490
        %v1562 = vunpack.c.l.b16 %v1491
        %v1563 = vunpack.c.l.b16 %v1492
        %v1564 = vunpack.c.l.b16 %v1493
        %v1565 = vunpack.c.l.b16 %v1494
        %v1566 = vunpack.c.l.b16 %v1495
        %v1567 = vunpack.c.l.b16 %v1496
        %v1568 = vunpack.c.l.b16 %v1497
        %v1569 = vunpack.c.l.b16 %v1498
        %v1570 = vunpack.c.l.b16 %v1499
        %v1571 = vunpack.c.l.b16 %v1500
        %v1572 = vunpack.c.l.b16 %v1501
        %v1573 = vunpack.c.l.b16 %v1502
        %v1574 = vunpack.c.l.b16 %v1503
        %v1575 = vunpack.c.l.b16 %v1504
        %v1576 = vunpack.c.l.b16 %v1505
        %v1577 = vunpack.c.l.b16 %v1506
        %v1578 = vunpack.c.l.b16 %v1507
        %v1579 = vunpack.c.l.b16 %v1508
        %v1580 = vunpack.c.l.b16 %v1509
        %v1581 = vunpack.c.l.b16 %v1510
        %v1582 = vunpack.c.l.b16 %v1511
        %v1583 = vunpack.c.l.b16 %v1512
        %v1584 = vunpack.c.l.b16 %v1513
        %v1585 = vunpack.c.l.b16 %v1514
        %v1586 = vunpack.c.l.b16 %v1515
        %v1587 = vunpack.c.l.b16 %v1516
        %v1588 = vunpack.c.l.b16 %v1517
        %v1589 = vunpack.c.l.b16 %v1518
        %v1590 = vunpack.c.l.b16 %v1519
        %v1591 = vpack.c.b16 %v1560, %v1559
        %v1592 = vpack.c.b16 %v1562, %v1561
        %v1593 = vpack.c.b16 %v1564, %v1563
        %v1594 = vpack.c.b16 %v1566, %v1565
        %v1595 = vpack.c.b16 %v1568, %v1567
        %v1596 = vpack.c.b16 %v1570, %v1569
        %v1597 = vpack.c.b16 %v1572, %v1571
        %v1598 = vpack.c.b16 %v1574, %v1573
        %v1599 = vpack.c.b16 %v1576, %v1575
        %v1600 = vpack.c.b16 %v1578, %v1577
        %v1601 = vpack.c.b16 %v1580, %v1579
        %v1602 = vpack.c.b16 %v1582, %v1581
        %v1603 = vpack.c.b16 %v1584, %v1583
        %v1604 = vpack.c.b16 %v1586, %v1585
        %v1605 = vpack.c.b16 %v1588, %v1587
        %v1606 = vpack.c.b16 %v1590, %v1589
        %1623 = vmatprep.subr.bf16.mxu0 0
        %1624 = vmatpush1.bf16.msra.mxu0 %v1591
        %1625 = vmatprep.subr.bf16.mxu0 0
        %1626 = vmatpush1.bf16.msra.mxu0 %v1592
        %1627 = vmatprep.subr.bf16.mxu0 0
        %1628 = vmatpush1.bf16.msra.mxu0 %v1593
        %1629 = vmatprep.subr.bf16.mxu0 0
        %1630 = vmatpush1.bf16.msra.mxu0 %v1594
        %1631 = vmatprep.subr.bf16.mxu0 0
        %1632 = vmatpush1.bf16.msra.mxu0 %v1595
        %1633 = vmatprep.subr.bf16.mxu0 0
        %1634 = vmatpush1.bf16.msra.mxu0 %v1596
        %1635 = vmatprep.subr.bf16.mxu0 0
        %1636 = vmatpush1.bf16.msra.mxu0 %v1597
        %1637 = vmatprep.subr.bf16.mxu0 0
        %1638 = vmatpush1.bf16.msra.mxu0 %v1598
        %1639 = vmatprep.subr.bf16.mxu0 0
        %1640 = vmatpush1.bf16.msra.mxu0 %v1599
        %1641 = vmatprep.subr.bf16.mxu0 0
        %1642 = vmatpush1.bf16.msra.mxu0 %v1600
        %1643 = vmatprep.subr.bf16.mxu0 0
        %1644 = vmatpush1.bf16.msra.mxu0 %v1601
        %1645 = vmatprep.subr.bf16.mxu0 0
        %1646 = vmatpush1.bf16.msra.mxu0 %v1602
        %1647 = vmatprep.subr.bf16.mxu0 0
        %1648 = vmatpush1.bf16.msra.mxu0 %v1603
        %1649 = vmatprep.subr.bf16.mxu0 0
        %1650 = vmatpush1.bf16.msra.mxu0 %v1604
        %1651 = vmatprep.subr.bf16.mxu0 0
        %1652 = vmatpush1.bf16.msra.mxu0 %v1605
        %1653 = vmatprep.subr.bf16.mxu0 0
        %1654 = vmatpush1.bf16.msra.mxu0 %v1606
        %1655 = vmatprep.mubr.bf16.mxu0 %v1376
        %1656 = vmatmul.mubr.bf16.gmra.mrb[0].mxu0 %v1456
        %v1657 = vpop.f32.mrb[0].mxu0
        %v1658 = vadd.f32 %v1525, %v1657
        %v1659 = vpop.f32.mrb[0].mxu0
        %v1660 = vpop.f32.mrb[0].mxu0
        %v1661 = vadd.f32 %v1525, %v1660
        %v1662 = vpop.f32.mrb[0].mxu0
        %1663 = vmatprep.mubr.bf16.mxu0 %v1377
        %1664 = vmatmul.mubr.bf16.gmra.mrb[0].mxu0 %v1457
        %v1665 = vpop.f32.mrb[0].mxu0
        %v1666 = vadd.f32 %v1525, %v1665
        %v1667 = vpop.f32.mrb[0].mxu0
        %v1668 = vpop.f32.mrb[0].mxu0
        %v1669 = vadd.f32 %v1525, %v1668
        %v1670 = vpop.f32.mrb[0].mxu0
        %1671 = vmatprep.mubr.bf16.mxu0 %v1378
        %1672 = vmatmul.mubr.bf16.gmra.mrb[0].mxu0 %v1458
        %v1673 = vpop.f32.mrb[0].mxu0
        %v1674 = vadd.f32 %v1525, %v1673
        %v1675 = vpop.f32.mrb[0].mxu0
        %v1676 = vpop.f32.mrb[0].mxu0
        %v1677 = vadd.f32 %v1525, %v1676
        %v1678 = vpop.f32.mrb[0].mxu0
        %1679 = vmatprep.mubr.bf16.mxu0 %v1379
        %1680 = vmatmul.mubr.bf16.gmra.mrb[0].mxu0 %v1459
        %v1681 = vpop.f32.mrb[0].mxu0
        %v1682 = vadd.f32 %v1525, %v1681
        %v1683 = vpop.f32.mrb[0].mxu0
        %v1684 = vpop.f32.mrb[0].mxu0
        %v1685 = vadd.f32 %v1525, %v1684
        %v1686 = vpop.f32.mrb[0].mxu0
        %1687 = vmatprep.mubr.bf16.mxu0 %v1380
        %1688 = vmatmul.mubr.bf16.gmra.mrb[0].mxu0 %v1460
        %v1689 = vpop.f32.mrb[0].mxu0
        %v1690 = vadd.f32 %v1525, %v1689
        %v1691 = vpop.f32.mrb[0].mxu0
        %v1692 = vpop.f32.mrb[0].mxu0
        %v1693 = vadd.f32 %v1525, %v1692
        %v1694 = vpop.f32.mrb[0].mxu0
        %1695 = vmatprep.mubr.bf16.mxu0 %v1381
        %1696 = vmatmul.mubr.bf16.gmra.mrb[0].mxu0 %v1461
        %v1697 = vpop.f32.mrb[0].mxu0
        %v1698 = vadd.f32 %v1525, %v1697
        %v1699 = vpop.f32.mrb[0].mxu0
        %v1700 = vpop.f32.mrb[0].mxu0
        %v1701 = vadd.f32 %v1525, %v1700
        %v1702 = vpop.f32.mrb[0].mxu0
        %1703 = vmatprep.mubr.bf16.mxu0 %v1382
        %1704 = vmatmul.mubr.bf16.gmra.mrb[0].mxu0 %v1462
        %v1705 = vpop.f32.mrb[0].mxu0
        %v1706 = vadd.f32 %v1525, %v1705
        %v1707 = vpop.f32.mrb[0].mxu0
        %v1708 = vpop.f32.mrb[0].mxu0
        %v1709 = vadd.f32 %v1525, %v1708
        %v1710 = vpop.f32.mrb[0].mxu0
        %1711 = vmatprep.mubr.bf16.mxu0 %v1383
        %1712 = vmatmul.mubr.bf16.gmra.mrb[0].mxu0 %v1463
        %v1713 = vpop.f32.mrb[0].mxu0
        %v1714 = vadd.f32 %v1525, %v1713
        %v1715 = vpop.f32.mrb[0].mxu0
        %v1716 = vpop.f32.mrb[0].mxu0
        %v1717 = vadd.f32 %v1525, %v1716
        %v1718 = vpop.f32.mrb[0].mxu0
        %1719 = vmatprep.mubr.bf16.mxu0 %v1384
        %1720 = vmatmul.mubr.bf16.gmra.mrb[0].mxu0 %v1464
        %v1721 = vpop.f32.mrb[0].mxu0
        %v1722 = vadd.f32 %v1525, %v1721
        %v1723 = vpop.f32.mrb[0].mxu0
        %v1724 = vpop.f32.mrb[0].mxu0
        %v1725 = vadd.f32 %v1525, %v1724
        %v1726 = vpop.f32.mrb[0].mxu0
        %1727 = vmatprep.mubr.bf16.mxu0 %v1385
        %1728 = vmatmul.mubr.bf16.gmra.mrb[0].mxu0 %v1465
        %v1729 = vpop.f32.mrb[0].mxu0
        %v1730 = vadd.f32 %v1525, %v1729
        %v1731 = vpop.f32.mrb[0].mxu0
        %v1732 = vpop.f32.mrb[0].mxu0
        %v1733 = vadd.f32 %v1525, %v1732
        %v1734 = vpop.f32.mrb[0].mxu0
        %1735 = vmatprep.mubr.bf16.mxu0 %v1386
        %1736 = vmatmul.mubr.bf16.gmra.mrb[0].mxu0 %v1466
        %v1737 = vpop.f32.mrb[0].mxu0
        %v1738 = vadd.f32 %v1525, %v1737
        %v1739 = vpop.f32.mrb[0].mxu0
        %v1740 = vpop.f32.mrb[0].mxu0
        %v1741 = vadd.f32 %v1525, %v1740
        %v1742 = vpop.f32.mrb[0].mxu0
        %1743 = vmatprep.mubr.bf16.mxu0 %v1387
        %1744 = vmatmul.mubr.bf16.gmra.mrb[0].mxu0 %v1467
        %v1745 = vpop.f32.mrb[0].mxu0
        %v1746 = vadd.f32 %v1525, %v1745
        %v1747 = vpop.f32.mrb[0].mxu0
        %v1748 = vpop.f32.mrb[0].mxu0
        %v1749 = vadd.f32 %v1525, %v1748
        %v1750 = vpop.f32.mrb[0].mxu0
        %1751 = vmatprep.mubr.bf16.mxu0 %v1388
        %1752 = vmatmul.mubr.bf16.gmra.mrb[0].mxu0 %v1468
        %v1753 = vpop.f32.mrb[0].mxu0
        %v1754 = vadd.f32 %v1525, %v1753
        %v1755 = vpop.f32.mrb[0].mxu0
        %v1756 = vpop.f32.mrb[0].mxu0
        %v1757 = vadd.f32 %v1525, %v1756
        %v1758 = vpop.f32.mrb[0].mxu0
        %1759 = vmatprep.mubr.bf16.mxu0 %v1389
        %1760 = vmatmul.mubr.bf16.gmra.mrb[0].mxu0 %v1469
        %v1761 = vpop.f32.mrb[0].mxu0
        %v1762 = vadd.f32 %v1525, %v1761
        %v1763 = vpop.f32.mrb[0].mxu0
        %v1764 = vpop.f32.mrb[0].mxu0
        %v1765 = vadd.f32 %v1525, %v1764
        %v1766 = vpop.f32.mrb[0].mxu0
        %1767 = vmatprep.mubr.bf16.mxu0 %v1390
        %1768 = vmatmul.mubr.bf16.gmra.mrb[0].mxu0 %v1470
        %v1769 = vpop.f32.mrb[0].mxu0
        %v1770 = vadd.f32 %v1525, %v1769
        %v1771 = vpop.f32.mrb[0].mxu0
        %v1772 = vpop.f32.mrb[0].mxu0
        %v1773 = vadd.f32 %v1525, %v1772
        %v1774 = vpop.f32.mrb[0].mxu0
        %1775 = vmatprep.mubr.bf16.mxu0 %v1391
        %1776 = vmatmul.mubr.bf16.gmra.mrb[0].mxu0 %v1471
        %v1777 = vpop.f32.mrb[0].mxu0
        %v1778 = vadd.f32 %v1525, %v1777
        %v1779 = vpop.f32.mrb[0].mxu0
        %v1780 = vpop.f32.mrb[0].mxu0
        %v1781 = vadd.f32 %v1525, %v1780
        %v1782 = vpop.f32.mrb[0].mxu0
        %1783 = vdwg.mxu0
        %v1784 = vmax.f32 %v1658, 0.0
        %v1785 = vmax.f32 %v1661, 0.0
        %v1786 = vmax.f32 %v1666, 0.0
        %v1787 = vmax.f32 %v1669, 0.0
        %v1788 = vmax.f32 %v1674, 0.0
        %v1789 = vmax.f32 %v1677, 0.0
        %v1790 = vmax.f32 %v1682, 0.0
        %v1791 = vmax.f32 %v1685, 0.0
        %v1792 = vmax.f32 %v1690, 0.0
        %v1793 = vmax.f32 %v1693, 0.0
        %v1794 = vmax.f32 %v1698, 0.0
        %v1795 = vmax.f32 %v1701, 0.0
        %v1796 = vmax.f32 %v1706, 0.0
        %v1797 = vmax.f32 %v1709, 0.0
        %v1798 = vmax.f32 %v1714, 0.0
        %v1799 = vmax.f32 %v1717, 0.0
        %v1800 = vmax.f32 %v1722, 0.0
        %v1801 = vmax.f32 %v1725, 0.0
        %v1802 = vmax.f32 %v1730, 0.0
        %v1803 = vmax.f32 %v1733, 0.0
        %v1804 = vmax.f32 %v1738, 0.0
        %v1805 = vmax.f32 %v1741, 0.0
        %v1806 = vmax.f32 %v1746, 0.0
        %v1807 = vmax.f32 %v1749, 0.0
        %v1808 = vmax.f32 %v1754, 0.0
        %v1809 = vmax.f32 %v1757, 0.0
        %v1810 = vmax.f32 %v1762, 0.0
        %v1811 = vmax.f32 %v1765, 0.0
        %v1812 = vmax.f32 %v1770, 0.0
        %v1813 = vmax.f32 %v1773, 0.0
        %v1814 = vmax.f32 %v1778, 0.0
        %v1815 = vmax.f32 %v1781, 0.0
        %v1816 = vld [vmem:[%s338] sm:$0xff]
        %v1817 = vld [vmem:[%s338 + $0x8] sm:$0xff]
        %v1818 = vld [vmem:[%s338 + $0x10] sm:$0xff]
        %v1819 = vld [vmem:[%s338 + $0x18] sm:$0xff]
        %v1820 = vld [vmem:[%s338 + $0x20] sm:$0xff]
        %v1821 = vld [vmem:[%s338 + $0x28] sm:$0xff]
        %v1822 = vld [vmem:[%s338 + $0x30] sm:$0xff]
        %v1823 = vld [vmem:[%s338 + $0x38] sm:$0xff]
        %v1824 = vld [vmem:[%s338 + $0x40] sm:$0xff]
        %v1825 = vld [vmem:[%s338 + $0x48] sm:$0xff]
        %v1826 = vld [vmem:[%s338 + $0x50] sm:$0xff]
        %v1827 = vld [vmem:[%s338 + $0x58] sm:$0xff]
        %v1828 = vld [vmem:[%s338 + $0x60] sm:$0xff]
        %v1829 = vld [vmem:[%s338 + $0x68] sm:$0xff]
        %v1830 = vld [vmem:[%s338 + $0x70] sm:$0xff]
        %v1831 = vld [vmem:[%s338 + $0x78] sm:$0xff]
        %v1832 = vld [vmem:[%s338 + $0x80] sm:$0xff]
        %v1833 = vld [vmem:[%s338 + $0x88] sm:$0xff]
        %v1834 = vld [vmem:[%s338 + $0x90] sm:$0xff]
        %v1835 = vld [vmem:[%s338 + $0x98] sm:$0xff]
        %v1836 = vld [vmem:[%s338 + $0xa0] sm:$0xff]
        %v1837 = vld [vmem:[%s338 + $0xa8] sm:$0xff]
        %v1838 = vld [vmem:[%s338 + $0xb0] sm:$0xff]
        %v1839 = vld [vmem:[%s338 + $0xb8] sm:$0xff]
        %v1840 = vld [vmem:[%s338 + $0xc0] sm:$0xff]
        %v1841 = vld [vmem:[%s338 + $0xc8] sm:$0xff]
        %v1842 = vld [vmem:[%s338 + $0xd0] sm:$0xff]
        %v1843 = vld [vmem:[%s338 + $0xd8] sm:$0xff]
        %v1844 = vld [vmem:[%s338 + $0xe0] sm:$0xff]
        %v1845 = vld [vmem:[%s338 + $0xe8] sm:$0xff]
        %v1846 = vld [vmem:[%s338 + $0xf0] sm:$0xff]
        %v1847 = vld [vmem:[%s338 + $0xf8] sm:$0xff]
        %v1848 = vmul.f32 %v1784, %v1816
        %v1849 = vmul.f32 %v1785, %v1817
        %v1850 = vmul.f32 %v1786, %v1818
        %v1851 = vmul.f32 %v1787, %v1819
        %v1852 = vmul.f32 %v1788, %v1820
        %v1853 = vmul.f32 %v1789, %v1821
        %v1854 = vmul.f32 %v1790, %v1822
        %v1855 = vmul.f32 %v1791, %v1823
        %v1856 = vmul.f32 %v1792, %v1824
        %v1857 = vmul.f32 %v1793, %v1825
        %v1858 = vmul.f32 %v1794, %v1826
        %v1859 = vmul.f32 %v1795, %v1827
        %v1860 = vmul.f32 %v1796, %v1828
        %v1861 = vmul.f32 %v1797, %v1829
        %v1862 = vmul.f32 %v1798, %v1830
        %v1863 = vmul.f32 %v1799, %v1831
        %v1864 = vmul.f32 %v1800, %v1832
        %v1865 = vmul.f32 %v1801, %v1833
        %v1866 = vmul.f32 %v1802, %v1834
        %v1867 = vmul.f32 %v1803, %v1835
        %v1868 = vmul.f32 %v1804, %v1836
        %v1869 = vmul.f32 %v1805, %v1837
        %v1870 = vmul.f32 %v1806, %v1838
        %v1871 = vmul.f32 %v1807, %v1839
        %v1872 = vmul.f32 %v1808, %v1840
        %v1873 = vmul.f32 %v1809, %v1841
        %v1874 = vmul.f32 %v1810, %v1842
        %v1875 = vmul.f32 %v1811, %v1843
        %v1876 = vmul.f32 %v1812, %v1844
        %v1877 = vmul.f32 %v1813, %v1845
        %v1878 = vmul.f32 %v1814, %v1846
        %v1879 = vmul.f32 %v1815, %v1847
        %v1880 = vpack.c.bf16 %v1849, %v1848
        %v1881 = vpack.c.bf16 %v1851, %v1850
        %v1882 = vpack.c.bf16 %v1853, %v1852
        %v1883 = vpack.c.bf16 %v1855, %v1854
        %v1884 = vpack.c.bf16 %v1857, %v1856
        %v1885 = vpack.c.bf16 %v1859, %v1858
        %v1886 = vpack.c.bf16 %v1861, %v1860
        %v1887 = vpack.c.bf16 %v1863, %v1862
        %v1888 = vpack.c.bf16 %v1865, %v1864
        %v1889 = vpack.c.bf16 %v1867, %v1866
        %v1890 = vpack.c.bf16 %v1869, %v1868
        %v1891 = vpack.c.bf16 %v1871, %v1870
        %v1892 = vpack.c.bf16 %v1873, %v1872
        %v1893 = vpack.c.bf16 %v1875, %v1874
        %v1894 = vpack.c.bf16 %v1877, %v1876
        %v1895 = vpack.c.bf16 %v1879, %v1878
        %v1912 = vunpack.c.l.b16 %v1880
        %v1913 = vunpack.c.h.b16 %v1880
        %v1914 = vunpack.c.l.b16 %v1881
        %v1915 = vunpack.c.h.b16 %v1881
        %v1916 = vunpack.c.l.b16 %v1882
        %v1917 = vunpack.c.h.b16 %v1882
        %v1918 = vunpack.c.l.b16 %v1883
        %v1919 = vunpack.c.h.b16 %v1883
        %v1920 = vunpack.c.l.b16 %v1884
        %v1921 = vunpack.c.h.b16 %v1884
        %v1922 = vunpack.c.l.b16 %v1885
        %v1923 = vunpack.c.h.b16 %v1885
        %v1924 = vunpack.c.l.b16 %v1886
        %v1925 = vunpack.c.h.b16 %v1886
        %v1926 = vunpack.c.l.b16 %v1887
        %v1927 = vunpack.c.h.b16 %v1887
        %v1928 = vunpack.c.l.b16 %v1888
        %v1929 = vunpack.c.h.b16 %v1888
        %v1930 = vunpack.c.l.b16 %v1889
        %v1931 = vunpack.c.h.b16 %v1889
        %v1932 = vunpack.c.l.b16 %v1890
        %v1933 = vunpack.c.h.b16 %v1890
        %v1934 = vunpack.c.l.b16 %v1891
        %v1935 = vunpack.c.h.b16 %v1891
        %v1936 = vunpack.c.l.b16 %v1892
        %v1937 = vunpack.c.h.b16 %v1892
        %v1938 = vunpack.c.l.b16 %v1893
        %v1939 = vunpack.c.h.b16 %v1893
        %v1940 = vunpack.c.l.b16 %v1894
        %v1941 = vunpack.c.h.b16 %v1894
        %v1942 = vunpack.c.l.b16 %v1895
        %v1943 = vunpack.c.h.b16 %v1895
        %v1944 = vpack.c.b16 %v1912, %v1912
        %v1945 = vpack.c.b16 %v1913, %v1913
        %v1946 = vpack.c.b16 %v1914, %v1914
        %v1947 = vpack.c.b16 %v1915, %v1915
        %v1948 = vpack.c.b16 %v1916, %v1916
        %v1949 = vpack.c.b16 %v1917, %v1917
        %v1950 = vpack.c.b16 %v1918, %v1918
        %v1951 = vpack.c.b16 %v1919, %v1919
        %v1952 = vpack.c.b16 %v1920, %v1920
        %v1953 = vpack.c.b16 %v1921, %v1921
        %v1954 = vpack.c.b16 %v1922, %v1922
        %v1955 = vpack.c.b16 %v1923, %v1923
        %v1956 = vpack.c.b16 %v1924, %v1924
        %v1957 = vpack.c.b16 %v1925, %v1925
        %v1958 = vpack.c.b16 %v1926, %v1926
        %v1959 = vpack.c.b16 %v1927, %v1927
        %v1960 = vpack.c.b16 %v1928, %v1928
        %v1961 = vpack.c.b16 %v1929, %v1929
        %v1962 = vpack.c.b16 %v1930, %v1930
        %v1963 = vpack.c.b16 %v1931, %v1931
        %v1964 = vpack.c.b16 %v1932, %v1932
        %v1965 = vpack.c.b16 %v1933, %v1933
        %v1966 = vpack.c.b16 %v1934, %v1934
        %v1967 = vpack.c.b16 %v1935, %v1935
        %v1968 = vpack.c.b16 %v1936, %v1936
        %v1969 = vpack.c.b16 %v1937, %v1937
        %v1970 = vpack.c.b16 %v1938, %v1938
        %v1971 = vpack.c.b16 %v1939, %v1939
        %v1972 = vpack.c.b16 %v1940, %v1940
        %v1973 = vpack.c.b16 %v1941, %v1941
        %v1974 = vpack.c.b16 %v1942, %v1942
        %v1975 = vpack.c.b16 %v1943, %v1943
        %2008 = vst [vmem:[%s376] sm:$0xf] %v1944
        %2009 = vst [vmem:[%s376 + $0x4] sm:$0xf] %v1945
        %2010 = vst [vmem:[%s376 + $0x8] sm:$0xf] %v1946
        %2011 = vst [vmem:[%s376 + $0xc] sm:$0xf] %v1947
        %2012 = vst [vmem:[%s376 + $0x10] sm:$0xf] %v1948
        %2013 = vst [vmem:[%s376 + $0x14] sm:$0xf] %v1949
        %2014 = vst [vmem:[%s376 + $0x18] sm:$0xf] %v1950
        %2015 = vst [vmem:[%s376 + $0x1c] sm:$0xf] %v1951
        %2016 = vst [vmem:[%s376 + $0x20] sm:$0xf] %v1952
        %2017 = vst [vmem:[%s376 + $0x24] sm:$0xf] %v1953
        %2018 = vst [vmem:[%s376 + $0x28] sm:$0xf] %v1954
        %2019 = vst [vmem:[%s376 + $0x2c] sm:$0xf] %v1955
        %2020 = vst [vmem:[%s376 + $0x30] sm:$0xf] %v1956
        %2021 = vst [vmem:[%s376 + $0x34] sm:$0xf] %v1957
        %2022 = vst [vmem:[%s376 + $0x38] sm:$0xf] %v1958
        %2023 = vst [vmem:[%s376 + $0x3c] sm:$0xf] %v1959
        %2024 = vst [vmem:[%s376 + $0x40] sm:$0xf] %v1960
        %2025 = vst [vmem:[%s376 + $0x44] sm:$0xf] %v1961
        %2026 = vst [vmem:[%s376 + $0x48] sm:$0xf] %v1962
        %2027 = vst [vmem:[%s376 + $0x4c] sm:$0xf] %v1963
        %2028 = vst [vmem:[%s376 + $0x50] sm:$0xf] %v1964
        %2029 = vst [vmem:[%s376 + $0x54] sm:$0xf] %v1965
        %2030 = vst [vmem:[%s376 + $0x58] sm:$0xf] %v1966
        %2031 = vst [vmem:[%s376 + $0x5c] sm:$0xf] %v1967
        %2032 = vst [vmem:[%s376 + $0x60] sm:$0xf] %v1968
        %2033 = vst [vmem:[%s376 + $0x64] sm:$0xf] %v1969
        %2034 = vst [vmem:[%s376 + $0x68] sm:$0xf] %v1970
        %2035 = vst [vmem:[%s376 + $0x6c] sm:$0xf] %v1971
        %2036 = vst [vmem:[%s376 + $0x70] sm:$0xf] %v1972
        %2037 = vst [vmem:[%s376 + $0x74] sm:$0xf] %v1973
        %2038 = vst [vmem:[%s376 + $0x78] sm:$0xf] %v1974
        %2039 = vst [vmem:[%s376 + $0x7c] sm:$0xf] %v1975
        %s2040 = sand.u32 %s176, 1
        %s2041 = scalar_lea.sflag [#allocation4], %s2040
        %s2042 = sand.u32 %s176, 1
        %s2043 = smul.addr %s2042, 128
        %s2044 = scalar_lea.vmem [#allocation11], %s2043
        // Predicated region
        $region65: #{tpu_custom_call.1} parent=43 // pred_check
          %p2045 = pneg %p186
        $region66: #{tpu_custom_call.1} parent=43 // pred_check_branch
          %2047 = sbr.rel (%p2045) target = $region68
        $region67: #{tpu_custom_call.1} parent=43 // pred_region
          %s2048 = smul.u32 32, %s27
          %s2050 = ssub.s32 2048, 2048
          %2051 = vsyncadd %s2041, %s2050
          %s2052 = smul.addr %s2048, 64
          %s2053 = scalar_lea.hbm %s6, %s2052
          %s2054 = sshll.u32 %s2044, 4
          %s2055 = int_to_ptr.vmem [resolvable:$true] %s2054
          %2060 = dma.vmem_to_hbm [thread:$0]  %s2055, 2048, %s2053, %s2041, 64, 64, 4
        $region68: #{tpu_custom_call.1} parent=43 // pred_fallthru
          _
      $region44: #{tpu_custom_call.1} parent=5 // pred_fallthru
        _
      %p2061 = scmp.le.s32.totalorder 2, %s22
      // Predicated region
      $region69: #{tpu_custom_call.1} parent=5 // pred_check
        %p2062 = pneg %p2061
      $region70: #{tpu_custom_call.1} parent=5 // pred_check_branch
        %2064 = sbr.rel (%p2062) target = $region72
      $region71: #{tpu_custom_call.1} parent=5 // pred_region
        %s2065 = ssub.s32 %s22, 2
        // Predicated region
        $region73: #{tpu_custom_call.1} parent=71 // pred_check
          %p2066 = pneg %p192
        $region74: #{tpu_custom_call.1} parent=71 // pred_check_branch
          %2068 = sbr.rel (%p2066) target = $region76
        $region75: #{tpu_custom_call.1} parent=71 // pred_region
          %s2069 = sand.u32 %s177, 1
          %s2070 = scalar_lea.sflag [#allocation4], %s2069
          %s2071 = sand.u32 %s177, 1
          %s2072 = smul.addr %s2071, 128
          %s2073 = scalar_lea.vmem [#allocation11], %s2072
          %2074 = dma.done %s2070, 2048
        $region76: #{tpu_custom_call.1} parent=71 // pred_fallthru
          _
      $region72: #{tpu_custom_call.1} parent=5 // pred_fallthru
        _
    $region6: #{tpu_custom_call.1} parent=1 // loop_footer
      %s26 = sadd.s32 1, %s22
    $region7: #{tpu_custom_call.1} parent=1 // loop_footer_branch
      %21 = sbr.rel target = $region3
    $region8: #{tpu_custom_call.1} parent=1 // loop_exit
      _
    %2075 = vsyncpa [#allocation3], 1
    %s2076 = scalar_lea.sflag [#allocation3], 1
    %2077 = vsyncpa %s2076, 1
    %2078 = vsyncpa [#allocation6], 1
    %2079 = vsyncpa [#allocation10], 1
    %s2080 = scalar_lea.sflag [#allocation10], 1
    %2081 = vsyncpa %s2080, 1
    %2082 = vsyncpa [#allocation4], 1
    %s2083 = scalar_lea.sflag [#allocation4], 1
    %2084 = vsyncpa %s2083, 1

</llo_original>
